<compile_context>
chip_gen: v6e
topology: v6e:2x2x1
jax: 0.10.0
libtpu: 0.0.40
codegen_flags: <defaults>
</compile_context>

<pallas_src>
import functools

import jax
import jax.numpy as jnp
import numpy as np
from jax import lax
from jax.experimental import pallas as pl
from jax.experimental.pallas import tpu as pltpu

LANE = 128
SUBLANE = 8
COMPUTE_DT = jnp.bfloat16     # MXU operand dtype; accumulation stays f32.
UNROLL_MAX_STEPS = 16         # fully unroll the recurrence below this many steps


def _round_up(x, m):
    return (x + m - 1) // m * m


def _vmem_cap_bytes():
    """Physical per-core VMEM for this generation (v5e/v6e: 128 MiB, v7x: 64 MiB)."""
    try:
        return int(pltpu.get_tpu_info().vmem_capacity_bytes)
    except Exception:
        return 64 << 20       # conservative fallback = v7x


def _vmem_limit(nbytes):
    """Scoped VMEM request: actual buffer bytes + headroom, ~87% of physical as the cap."""
    cap = int(0.87 * _vmem_cap_bytes())
    return int(min(cap, max(32 << 20, nbytes + (8 << 20))))


def _largest_divisor_tile(total, unit, target):
    """Largest multiple of `unit` dividing `total` and <= target (falls back to `unit`)."""
    best = unit
    t = unit
    while t <= min(target, total):
        if total % t == 0:
            best = t
        t += unit
    return best


def _pick_vocab_tile(V_p, R, M_p):
    """Vocab tile: as large as the generation's VMEM allows, but keep grid >= 2 (v7x 2 TCs)."""
    cap = int(0.85 * _vmem_cap_bytes())
    best = LANE
    for tn in (128, 256, 512, 1024, 2048):
        if V_p % tn:
            continue
        if tn > LANE and V_p // tn < 2:
            break
        need = 2 * (R * M_p * 2 + M_p * tn * 2 + tn * 4 + R * tn * 4) + (8 << 20)
        if need <= cap:
            best = tn
    return best


# --------------------------------------------------------------------------------------
# Stage 0: K-tiled init projection  hc0 = feat @ [w_init_h | w_init_c] + [b_h | b_c]
# --------------------------------------------------------------------------------------
def init_proj_kernel(feat_ref, w_ref, b_ref, out_ref, acc_ref):
    @pl.when(pl.program_id(0) == 0)
    def _init():
        acc_ref[...] = jnp.zeros_like(acc_ref)

    acc_ref[...] += jnp.dot(feat_ref[...], w_ref[...], preferred_element_type=jnp.float32)

    @pl.when(pl.program_id(0) == pl.num_programs(0) - 1)
    def _finalize():
        out_ref[...] = acc_ref[...] + b_ref[...]


# --------------------------------------------------------------------------------------
# Stage 1: hoisted input projection  gx = cap_emb @ w_ih + b_gates  (one gate-column tile)
# --------------------------------------------------------------------------------------
def input_proj_kernel(x_ref, w_ref, b_ref, gx_ref):
    gx_ref[...] = (jnp.dot(x_ref[...], w_ref[...], preferred_element_type=jnp.float32)
                   + b_ref[...])


# --------------------------------------------------------------------------------------
# Stage 2: serial LSTM recurrence (gridless; only the true step-to-step dependency)
# --------------------------------------------------------------------------------------
def recurrence_kernel(hc0_ref, gx_ref, whh_ref, hs_ref, *, n_steps):
    """hc0:(B,2Mp) f32   gx:(T-1,B,4Mp) f32 (bias folded)   whh:(Mp,4Mp) bf16
    hs (out): (T-1,B,Mp) bf16.  Gate column order is (i, f, o, g)."""
    M = hs_ref.shape[2]
    hn = hc0_ref[:, :M]
    cn = hc0_ref[:, M:]
    w_hh = whh_ref[...]                       # loop-invariant weight read, hoisted
    # TODO(synk): for M_p small enough to fit MXU staging, the per-step w_hh weight push
    # could be amortized with pltpu.matmul_push_rhs / matmul_acc_lhs; kept on jnp.dot here.

    def step(t, hn, cn):
        gates = gx_ref[t] + jnp.dot(hn.astype(w_hh.dtype), w_hh,
                                    preferred_element_type=jnp.float32)
        sig = jax.nn.sigmoid(gates[:, :3 * M])          # i, f, o in one contiguous slice
        i_g = sig[:, 0 * M:1 * M]
        f_g = sig[:, 1 * M:2 * M]
        o_g = sig[:, 2 * M:3 * M]
        g_g = jnp.tanh(gates[:, 3 * M:4 * M])
        cn = f_g * cn + i_g * g_g
        hn = o_g * jnp.tanh(cn)
        hs_ref[t] = hn.astype(hs_ref.dtype)             # bf16; vocab matmul deferred to Stage 3
        return hn, cn

    if n_steps <= UNROLL_MAX_STEPS:
        # Small static trip count: full unroll gives the LLO scheduler cross-step visibility.
        for t in range(n_steps):
            hn, cn = step(t, hn, cn)
    else:
        # Long sequences: bounded vreg pressure, carries stay live in registers/VMEM.
        lax.fori_loop(0, n_steps, lambda t, c: step(t, *c), (hn, cn), unroll=2)


# --------------------------------------------------------------------------------------
# Stage 3: deferred vocab projection, tiled over the vocab axis ("parallel" grid)
# --------------------------------------------------------------------------------------
def vocab_proj_kernel(hs_ref, wo_ref, bo_ref, out_ref):
    # hs is already bf16 -> no per-tile cast.
    out_ref[...] = (jnp.dot(hs_ref[...], wo_ref[...], preferred_element_type=jnp.float32)
                    + bo_ref[...])


# --------------------------------------------------------------------------------------
# Wrapper
# --------------------------------------------------------------------------------------
@jax.jit
def simple_decoder_forward(params, feature, caption):
    """feature: (bs, S*S, feature_dim) f32; caption: (bs, T) int32.
    Returns logits (bs, vocab_size, T-1), matching the PyTorch module."""
    bs = feature.shape[0]
    T = caption.shape[1]
    n_steps = T - 1
    M = params["w_hh"].shape[0]
    V = params["w_out"].shape[1]
    E = params["emb"].shape[1]
    F_flat = feature.shape[1] * feature.shape[2]

    bs_p = _round_up(bs, SUBLANE)
    M_p = _round_up(M, LANE)
    V_p = _round_up(V, LANE)
    E_p = _round_up(E, LANE)
    F_p = _round_up(F_flat, LANE)
    R = n_steps * bs_p

    # ---- pad + cast parameters (layout plumbing; zero padding is exact) ----
    def pad2(x, r, c):
        return jnp.pad(x, ((0, r - x.shape[0]), (0, c - x.shape[1])))

    GATE_PERM = (0, 1, 3, 2)  # PyTorch (i,f,g,o) -> (i,f,o,g): 3 sigmoids on one slice

    def pad_gates(w, rows_p):
        w4 = w.reshape(w.shape[0], 4, M)[:, GATE_PERM, :]
        w4 = jnp.pad(w4, ((0, rows_p - w.shape[0]), (0, 0), (0, M_p - M)))
        return w4.reshape(rows_p, 4 * M_p)

    # Fused init weights: one (F_p, 2*M_p) operand (hn cols [0:M_p), cn cols [M_p:2M_p)).
    w_init = jnp.concatenate([pad2(params["w_init_h"], F_p, M_p),
                              pad2(params["w_init_c"], F_p, M_p)], axis=1).astype(COMPUTE_DT)
    b_init = jnp.concatenate([pad2(params["b_init_h"], 1, M_p),
                              pad2(params["b_init_c"], 1, M_p)], axis=1)

    w_ih = pad_gates(params["w_ih"], E_p).astype(COMPUTE_DT)
    w_hh = pad_gates(params["w_hh"], M_p).astype(COMPUTE_DT)
    b_g = pad_gates(params["b_gates"], 1)
    w_out = pad2(params["w_out"], M_p, V_p).astype(COMPUTE_DT)
    b_out = pad2(params["b_out"], 1, V_p)

    # ---- inputs: pad batch to sublane multiple, flatten feature like torch reshape(bs,-1) ----
    feat = feature.reshape(bs, -1)
    feat = jnp.pad(feat, ((0, bs_p - bs), (0, F_p - F_flat))).astype(COMPUTE_DT)

    cap = jnp.pad(caption, ((0, bs_p - bs), (0, 0)))            # padded rows use token 0
    emb_p = jnp.pad(params["emb"], ((0, 0), (0, E_p - E))).astype(COMPUTE_DT)
    # TODO(synk): at large E/T the gather + transpose could move in-kernel via
    # PrefetchScalarGridSpec (caption ids in SMEM) to avoid one HBM round trip.
    cap_emb = jnp.take(emb_p, cap[:, :n_steps], axis=0)         # (bs_p, T-1, E_p)
    cap2d = jnp.transpose(cap_emb, (1, 0, 2)).reshape(R, E_p)   # time-major rows

    # ---- Stage 0: K-tiled init projection (init weights are streamed, never resident) ----
    TK = _largest_divisor_tile(F_p, LANE, 2048)
    s0_bytes = 2 * (bs_p * TK * 2 + TK * 2 * M_p * 2 + 2 * M_p * 4) + 3 * bs_p * 2 * M_p * 4
    hc0 = pl.pallas_call(
        init_proj_kernel,
        out_shape=jax.ShapeDtypeStruct((bs_p, 2 * M_p), jnp.float32),
        grid=(F_p // TK,),
        in_specs=[pl.BlockSpec((bs_p, TK), lambda k: (0, k)),
                  pl.BlockSpec((TK, 2 * M_p), lambda k: (k, 0)),
                  pl.BlockSpec((1, 2 * M_p), lambda k: (0, 0))],
        out_specs=pl.BlockSpec((bs_p, 2 * M_p), lambda k: (0, 0)),
        scratch_shapes=[pltpu.VMEM((bs_p, 2 * M_p), jnp.float32)],
        compiler_params=pltpu.CompilerParams(
            dimension_semantics=("arbitrary",),
            vmem_limit_bytes=_vmem_limit(s0_bytes)),
    )(feat, w_init, b_init)

    # ---- Stage 1: input projection, "parallel" over the 4 gate-column blocks ----
    s1_bytes = 2 * (R * E_p * 2 + E_p * M_p * 2 + M_p * 4 + R * M_p * 4)
    gx = pl.pallas_call(
        input_proj_kernel,
        out_shape=jax.ShapeDtypeStruct((R, 4 * M_p), jnp.float32),
        grid=(4,),
        in_specs=[pl.BlockSpec((R, E_p), lambda j: (0, 0)),     # constant index -> DMA'd once
                  pl.BlockSpec((E_p, M_p), lambda j: (0, j)),
                  pl.BlockSpec((1, M_p), lambda j: (0, j))],
        out_specs=pl.BlockSpec((R, M_p), lambda j: (0, j)),
        compiler_params=pltpu.CompilerParams(
            dimension_semantics=("parallel",),
            vmem_limit_bytes=_vmem_limit(s1_bytes)),
    )(cap2d, w_ih, b_g)

    # ---- Stage 2: serial recurrence (gridless; only data-dependent work remains here) ----
    gx3 = gx.reshape(n_steps, bs_p, 4 * M_p)
    s2_bytes = (bs_p * 2 * M_p * 4 + R * 4 * M_p * 4 + M_p * 4 * M_p * 2 + R * M_p * 2)
    hs3 = pl.pallas_call(
        functools.partial(recurrence_kernel, n_steps=n_steps),
        out_shape=jax.ShapeDtypeStruct((n_steps, bs_p, M_p), COMPUTE_DT),
        in_specs=[pl.BlockSpec(memory_space=pltpu.MemorySpace.VMEM)] * 3,
        out_specs=pl.BlockSpec(memory_space=pltpu.MemorySpace.VMEM),
        compiler_params=pltpu.CompilerParams(vmem_limit_bytes=_vmem_limit(s2_bytes)),
    )(hc0, gx3, w_hh)

    # ---- Stage 3: one tall (R, M_p) @ (M_p, V_p) matmul, tiled over V ("parallel") ----
    hs = hs3.reshape(R, M_p)                                    # bf16, time-major rows
    TN = _pick_vocab_tile(V_p, R, M_p)
    s3_bytes = 2 * (R * M_p * 2 + M_p * TN * 2 + TN * 4 + R * TN * 4)
    out2d = pl.pallas_call(
        vocab_proj_kernel,
        out_shape=jax.ShapeDtypeStruct((R, V_p), jnp.float32),
        grid=(V_p // TN,),
        in_specs=[pl.BlockSpec((R, M_p), lambda j: (0, 0)),     # constant index -> resident
                  pl.BlockSpec((M_p, TN), lambda j: (0, j)),
                  pl.BlockSpec((1, TN), lambda j: (0, j))],
        out_specs=pl.BlockSpec((R, TN), lambda j: (0, j)),
        compiler_params=pltpu.CompilerParams(
            dimension_semantics=("parallel",),
            vmem_limit_bytes=_vmem_limit(s3_bytes)),
    )(hs, w_out, b_out)

    # layout: (R, V_p) -> (T-1, bs, V) -> (bs, V, T-1); slice padding BEFORE the transpose.
    # TODO(synk): the (bs, V, T-1) layout is mandated by the module spec; if a consumer
    # accepted (bs, T-1, V) the final full-logits transpose could be dropped.
    out = out2d.reshape(n_steps, bs_p, V_p)[:, :bs, :V]
    return jnp.transpose(out, (1, 2, 0))


# --------------------------------------------------------------------------------------
# Pure-JAX reference with matched bf16 operand quantization (same MXU precision policy).
# --------------------------------------------------------------------------------------
def reference_forward(params, feature, caption):
    bs = feature.shape[0]
    T = caption.shape[1]
    M = params["w_hh"].shape[0]
    cdt = COMPUTE_DT

    feat = feature.reshape(bs, -1).astype(cdt)
    hn = jnp.dot(feat, params["w_init_h"].astype(cdt),
                 preferred_element_type=jnp.float32) + params["b_init_h"]
    cn = jnp.dot(feat, params["w_init_c"].astype(cdt),
                 preferred_element_type=jnp.float32) + params["b_init_c"]
    cap_emb = jnp.take(params["emb"].astype(cdt), caption, axis=0)
    w_ih = params["w_ih"].astype(cdt)
    w_hh = params["w_hh"].astype(cdt)
    w_out = params["w_out"].astype(cdt)

    outs = []
    for step in range(T - 1):
        x = cap_emb[:, step, :]
        gates = (jnp.dot(x, w_ih, preferred_element_type=jnp.float32)
                 + jnp.dot(hn.astype(cdt), w_hh, preferred_element_type=jnp.float32)
                 + params["b_gates"])
        i_g = jax.nn.sigmoid(gates[:, 0 * M:1 * M])
        f_g = jax.nn.sigmoid(gates[:, 1 * M:2 * M])
        g_g = jnp.tanh(gates[:, 2 * M:3 * M])
        o_g = jax.nn.sigmoid(gates[:, 3 * M:4 * M])
        cn = f_g * cn + i_g * g_g
        hn = o_g * jnp.tanh(cn)
        outs.append(jnp.dot(hn.astype(cdt), w_out,
                            preferred_element_type=jnp.float32) + params["b_out"])
    return jnp.stack(outs, axis=-1)                              # (bs, V, T-1)


def make_params(key, feature_dim, spatial_size, emb_dim, memory_dim, vocab_size):
    f_flat = feature_dim * spatial_size * spatial_size
    ks = jax.random.split(key, 12)
    s = 0.1
    return {
        "w_init_h": s * jax.random.normal(ks[0], (f_flat, memory_dim), jnp.float32),
        "b_init_h": s * jax.random.normal(ks[1], (1, memory_dim), jnp.float32),
        "w_init_c": s * jax.random.normal(ks[2], (f_flat, memory_dim), jnp.float32),
        "b_init_c": s * jax.random.normal(ks[3], (1, memory_dim), jnp.float32),
        "emb":      s * jax.random.normal(ks[4], (vocab_size, emb_dim), jnp.float32),
        "w_ih":     s * jax.random.normal(ks[5], (emb_dim, 4 * memory_dim), jnp.float32),
        "w_hh":     s * jax.random.normal(ks[6], (memory_dim, 4 * memory_dim), jnp.float32),
        # b_gates = bias_ih + bias_hh (they only ever appear summed)
        "b_gates":  s * jax.random.normal(ks[7], (1, 4 * memory_dim), jnp.float32),
        "w_out":    s * jax.random.normal(ks[8], (memory_dim, vocab_size), jnp.float32),
        "b_out":    s * jax.random.normal(ks[9], (1, vocab_size), jnp.float32),
    }


if __name__ == "__main__":
    # Small, module-consistent config.
    bs = 2
    feature_dim = 8
    spatial_size = 4        # feature is (bs, spatial_size**2, feature_dim)
    emb_dim = 16
    memory_dim = 32
    vocab_size = 64
    max_seqlen = 8
    # dropout_p -> identity (eval), ss_prob = 0.0 -> teacher forcing, bos_idx unused in forward.

    key = jax.random.PRNGKey(0)
    k_param, k_feat, k_cap = jax.random.split(key, 3)
    params = make_params(k_param, feature_dim, spatial_size, emb_dim, memory_dim, vocab_size)

    feature = jax.random.normal(k_feat, (bs, spatial_size * spatial_size, feature_dim),
                                jnp.float32)
    caption = jax.random.randint(k_cap, (bs, max_seqlen), 0, vocab_size, jnp.int32)
    length = jnp.full((bs,), max_seqlen, jnp.int32)          # unused by forward (as in PyTorch)

    out = simple_decoder_forward(params, feature, caption)
    out = jax.block_until_ready(out)

    ref = jax.block_until_ready(reference_forward(params, feature, caption))

    assert out.shape == (bs, vocab_size, max_seqlen - 1), out.shape
    np.testing.assert_allclose(np.asarray(out), np.asarray(ref), rtol=2e-3, atol=2e-3)

    print("KERNEL_OK")
</pallas_src>

<mosaic_0001>
module attributes {stable_mosaic.version = 11 : i64} {
  func.func @input_proj_kernel(%arg0: i32, %arg1: memref<56x128xbf16, #tpu.memory_space<vmem>>, %arg2: memref<128x128xbf16, #tpu.memory_space<vmem>>, %arg3: memref<1x128xf32, #tpu.memory_space<vmem>>, %arg4: memref<56x128xf32, #tpu.memory_space<vmem>>) attributes {dimension_semantics = [#tpu.dimension_semantics<parallel>], iteration_bounds = array<i64: 4>, scalar_prefetch = 0 : i64, scratch_operands = 0 : i64, tpu.core_type = #tpu.core_type<tc>, window_params = [{pipeline_mode = #tpu.pipeline_mode<synchronous>, transform_indices = @transform_0, window_bounds = array<i64: 56, 128>}, {transform_indices = @transform_1, window_bounds = array<i64: 128, 128>}, {transform_indices = @transform_2, window_bounds = array<i64: 1, 128>}, {transform_indices = @transform_3, window_bounds = array<i64: 56, 128>}]} {
    %c0 = arith.constant 0 : index
    %c0_0 = arith.constant 0 : index
    %0 = vector.load %arg1[%c0, %c0_0] : memref<56x128xbf16, #tpu.memory_space<vmem>>, vector<56x128xbf16>
    %c0_1 = arith.constant 0 : index
    %c0_2 = arith.constant 0 : index
    %1 = vector.load %arg2[%c0_1, %c0_2] : memref<128x128xbf16, #tpu.memory_space<vmem>>, vector<128x128xbf16>
    %cst = arith.constant dense<0.000000e+00> : vector<56x128xf32>
    %2 = tpu.matmul %0, %1, %cst {dimension_numbers = #tpu.dot_dimension_numbers<[1], [0], [0], [1], [0, 0, 1, 1], [], []>} : vector<56x128xbf16>, vector<128x128xbf16>, vector<56x128xf32> -> vector<56x128xf32>
    %c0_3 = arith.constant 0 : index
    %c0_4 = arith.constant 0 : index
    %3 = vector.load %arg3[%c0_3, %c0_4] : memref<1x128xf32, #tpu.memory_space<vmem>>, vector<1x128xf32>
    %4 = vector.broadcast %3 : vector<1x128xf32> to vector<56x128xf32>
    %5 = arith.addf %2, %4 : vector<56x128xf32>
    %c0_5 = arith.constant 0 : index
    %c0_6 = arith.constant 0 : index
    %6 = vector.load %arg4[%c0_5, %c0_6] : memref<56x128xf32, #tpu.memory_space<vmem>>, vector<56x128xf32>
    tpu.vector_store %arg4[%c0_5, %c0_6], %5 {strides = array<i32>} : memref<56x128xf32, #tpu.memory_space<vmem>>, vector<56x128xf32>,
    return
  }
  func.func @transform_0(%arg0: i32) -> (i32, i32) {
    %c0_i32 = arith.constant 0 : i32
    %c0_i32_0 = arith.constant 0 : i32
    %c0_i32_1 = arith.constant 0 : i32
    return %c0_i32, %c0_i32_0 : i32, i32
  }
  func.func @transform_1(%arg0: i32) -> (i32, i32) {
    %c0_i32 = arith.constant 0 : i32
    %c0_i32_0 = arith.constant 0 : i32
    return %c0_i32, %arg0 : i32, i32
  }
  func.func @transform_2(%arg0: i32) -> (i32, i32) {
    %c0_i32 = arith.constant 0 : i32
    %c0_i32_0 = arith.constant 0 : i32
    return %c0_i32, %arg0 : i32, i32
  }
  func.func @transform_3(%arg0: i32) -> (i32, i32) {
    %c0_i32 = arith.constant 0 : i32
    %c0_i32_0 = arith.constant 0 : i32
    return %c0_i32, %arg0 : i32, i32
  }
}

module attributes {stable_mosaic.version = 11 : i64} {
  func.func @init_proj_kernel(%arg0: i32, %arg1: memref<8x128xbf16, #tpu.memory_space<vmem>>, %arg2: memref<128x256xbf16, #tpu.memory_space<vmem>>, %arg3: memref<1x256xf32, #tpu.memory_space<vmem>>, %arg4: memref<8x256xf32, #tpu.memory_space<vmem>>, %arg5: memref<8x256xf32, #tpu.memory_space<vmem>>) attributes {dimension_semantics = [#tpu.dimension_semantics<arbitrary>], iteration_bounds = array<i64: 1>, scalar_prefetch = 0 : i64, scratch_operands = 1 : i64, tpu.core_type = #tpu.core_type<tc>, window_params = [{transform_indices = @transform_0, window_bounds = array<i64: 8, 128>}, {transform_indices = @transform_1, window_bounds = array<i64: 128, 256>}, {pipeline_mode = #tpu.pipeline_mode<synchronous>, transform_indices = @transform_2, window_bounds = array<i64: 1, 256>}, {pipeline_mode = #tpu.pipeline_mode<synchronous>, transform_indices = @transform_3, window_bounds = array<i64: 8, 256>}]} {
    %c0_i32 = arith.constant 0 : i32
    %0 = arith.cmpi eq, %arg0, %c0_i32 : i32
    %1 = arith.extui %0 : i1 to i32
    %c0_i32_0 = arith.constant 0 : i32
    %2 = arith.cmpi ne, %1, %c0_i32_0 : i32
    scf.if %2 {
      %cst_10 = arith.constant 0.000000e+00 : f32
      %12 = vector.broadcast %cst_10 : f32 to vector<8x256xf32>
      %c0_11 = arith.constant 0 : index
      %c0_12 = arith.constant 0 : index
      %13 = vector.load %arg5[%c0_11, %c0_12] : memref<8x256xf32, #tpu.memory_space<vmem>>, vector<8x256xf32>
      tpu.vector_store %arg5[%c0_11, %c0_12], %12 {strides = array<i32>} : memref<8x256xf32, #tpu.memory_space<vmem>>, vector<8x256xf32>,
    } else {
    }
    %c0 = arith.constant 0 : index
    %c0_1 = arith.constant 0 : index
    %3 = vector.load %arg5[%c0, %c0_1] : memref<8x256xf32, #tpu.memory_space<vmem>>, vector<8x256xf32>
    %c0_2 = arith.constant 0 : index
    %c0_3 = arith.constant 0 : index
    %4 = vector.load %arg1[%c0_2, %c0_3] : memref<8x128xbf16, #tpu.memory_space<vmem>>, vector<8x128xbf16>
    %c0_4 = arith.constant 0 : index
    %c0_5 = arith.constant 0 : index
    %5 = vector.load %arg2[%c0_4, %c0_5] : memref<128x256xbf16, #tpu.memory_space<vmem>>, vector<128x256xbf16>
    %cst = arith.constant dense<0.000000e+00> : vector<8x256xf32>
    %6 = tpu.matmul %4, %5, %cst {dimension_numbers = #tpu.dot_dimension_numbers<[1], [0], [0], [1], [0, 0, 1, 1], [], []>} : vector<8x128xbf16>, vector<128x256xbf16>, vector<8x256xf32> -> vector<8x256xf32>
    %7 = arith.addf %3, %6 : vector<8x256xf32>
    %c0_6 = arith.constant 0 : index
    %c0_7 = arith.constant 0 : index
    %8 = vector.load %arg5[%c0_6, %c0_7] : memref<8x256xf32, #tpu.memory_space<vmem>>, vector<8x256xf32>
    tpu.vector_store %arg5[%c0_6, %c0_7], %7 {strides = array<i32>} : memref<8x256xf32, #tpu.memory_space<vmem>>, vector<8x256xf32>,
    %c0_i32_8 = arith.constant 0 : i32
    %9 = arith.cmpi eq, %arg0, %c0_i32_8 : i32
    %10 = arith.extui %9 : i1 to i32
    %c0_i32_9 = arith.constant 0 : i32
    %11 = arith.cmpi ne, %10, %c0_i32_9 : i32
    scf.if %11 {
      %c0_10 = arith.constant 0 : index
      %c0_11 = arith.constant 0 : index
      %12 = vector.load %arg5[%c0_10, %c0_11] : memref<8x256xf32, #tpu.memory_space<vmem>>, vector<8x256xf32>
      %c0_12 = arith.constant 0 : index
      %c0_13 = arith.constant 0 : index
      %13 = vector.load %arg3[%c0_12, %c0_13] : memref<1x256xf32, #tpu.memory_space<vmem>>, vector<1x256xf32>
      %14 = vector.broadcast %13 : vector<1x256xf32> to vector<8x256xf32>
      %15 = arith.addf %12, %14 : vector<8x256xf32>
      %c0_14 = arith.constant 0 : index
      %c0_15 = arith.constant 0 : index
      %16 = vector.load %arg4[%c0_14, %c0_15] : memref<8x256xf32, #tpu.memory_space<vmem>>, vector<8x256xf32>
      tpu.vector_store %arg4[%c0_14, %c0_15], %15 {strides = array<i32>} : memref<8x256xf32, #tpu.memory_space<vmem>>, vector<8x256xf32>,
    } else {
    }
    return
  }
  func.func @transform_0(%arg0: i32) -> (i32, i32) {
    %c0_i32 = arith.constant 0 : i32
    %c0_i32_0 = arith.constant 0 : i32
    return %c0_i32, %arg0 : i32, i32
  }
  func.func @transform_1(%arg0: i32) -> (i32, i32) {
    %c0_i32 = arith.constant 0 : i32
    %c0_i32_0 = arith.constant 0 : i32
    return %arg0, %c0_i32 : i32, i32
  }
  func.func @transform_2(%arg0: i32) -> (i32, i32) {
    %c0_i32 = arith.constant 0 : i32
    %c0_i32_0 = arith.constant 0 : i32
    %c0_i32_1 = arith.constant 0 : i32
    return %c0_i32, %c0_i32_0 : i32, i32
  }
  func.func @transform_3(%arg0: i32) -> (i32, i32) {
    %c0_i32 = arith.constant 0 : i32
    %c0_i32_0 = arith.constant 0 : i32
    %c0_i32_1 = arith.constant 0 : i32
    return %c0_i32, %c0_i32_0 : i32, i32
  }
}

module attributes {stable_mosaic.version = 11 : i64} {
  func.func @recurrence_kernel(%arg0: memref<8x256xf32, #tpu.memory_space<vmem>>, %arg1: memref<7x8x512xf32, #tpu.memory_space<vmem>>, %arg2: memref<128x512xbf16, #tpu.memory_space<vmem>>, %arg3: memref<7x8x128xbf16, #tpu.memory_space<vmem>>) attributes {dimension_semantics = [], scalar_prefetch = 0 : i64, scratch_operands = 0 : i64, tpu.core_type = #tpu.core_type<tc>} {
    %c0 = arith.constant 0 : index
    %c0_0 = arith.constant 0 : index
    %0 = vector.load %arg0[%c0, %c0_0] : memref<8x256xf32, #tpu.memory_space<vmem>>, vector<8x128xf32>
    %c0_1 = arith.constant 0 : index
    %c128 = arith.constant 128 : index
    %1 = vector.load %arg0[%c0_1, %c128] : memref<8x256xf32, #tpu.memory_space<vmem>>, vector<8x128xf32>
    %c0_2 = arith.constant 0 : index
    %c0_3 = arith.constant 0 : index
    %2 = vector.load %arg2[%c0_2, %c0_3] : memref<128x512xbf16, #tpu.memory_space<vmem>>, vector<128x512xbf16>
    %c0_4 = arith.constant 0 : index
    %c0_5 = arith.constant 0 : index
    %c0_6 = arith.constant 0 : index
    %3 = vector.load %arg1[%c0_4, %c0_5, %c0_6] : memref<7x8x512xf32, #tpu.memory_space<vmem>>, vector<1x8x512xf32>
    %4 = vector.shape_cast %3 : vector<1x8x512xf32> to vector<8x512xf32>
    %5 = arith.truncf %0 : vector<8x128xf32> to vector<8x128xbf16>
    %cst = arith.constant dense<0.000000e+00> : vector<8x512xf32>
    %6 = tpu.matmul %5, %2, %cst {dimension_numbers = #tpu.dot_dimension_numbers<[1], [0], [0], [1], [0, 0, 1, 1], [], []>} : vector<8x128xbf16>, vector<128x512xbf16>, vector<8x512xf32> -> vector<8x512xf32>
    %7 = arith.addf %4, %6 : vector<8x512xf32>
    %8 = vector.extract_strided_slice %7 {offsets = [0, 0], sizes = [8, 384], strides = [1, 1]} : vector<8x512xf32> to vector<8x384xf32>
    %9 = arith.negf %8 : vector<8x384xf32>
    %10 = math.exp %9 : vector<8x384xf32>
    %cst_7 = arith.constant 1.000000e+00 : f32
    %11 = vector.broadcast %cst_7 : f32 to vector<8x384xf32>
    %12 = arith.addf %11, %10 : vector<8x384xf32>
    %13 = arith.divf %11, %12 : vector<8x384xf32>
    %14 = vector.extract_strided_slice %13 {offsets = [0, 0], sizes = [8, 128], strides = [1, 1]} : vector<8x384xf32> to vector<8x128xf32>
    %15 = vector.extract_strided_slice %13 {offsets = [0, 128], sizes = [8, 128], strides = [1, 1]} : vector<8x384xf32> to vector<8x128xf32>
    %16 = vector.extract_strided_slice %13 {offsets = [0, 256], sizes = [8, 128], strides = [1, 1]} : vector<8x384xf32> to vector<8x128xf32>
    %17 = vector.extract_strided_slice %7 {offsets = [0, 384], sizes = [8, 128], strides = [1, 1]} : vector<8x512xf32> to vector<8x128xf32>
    %18 = math.tanh %17 : vector<8x128xf32>
    %19 = arith.mulf %15, %1 : vector<8x128xf32>
    %20 = arith.mulf %14, %18 : vector<8x128xf32>
    %21 = arith.addf %19, %20 : vector<8x128xf32>
    %22 = math.tanh %21 : vector<8x128xf32>
    %23 = arith.mulf %16, %22 : vector<8x128xf32>
    %24 = arith.truncf %23 : vector<8x128xf32> to vector<8x128xbf16>
    %c0_8 = arith.constant 0 : index
    %c0_9 = arith.constant 0 : index
    %c0_10 = arith.constant 0 : index
    %25 = vector.load %arg3[%c0_8, %c0_9, %c0_10] : memref<7x8x128xbf16, #tpu.memory_space<vmem>>, vector<1x8x128xbf16>
    %26 = vector.shape_cast %25 : vector<1x8x128xbf16> to vector<8x128xbf16>
    %27 = vector.shape_cast %24 : vector<8x128xbf16> to vector<1x8x128xbf16>
    tpu.vector_store %arg3[%c0_8, %c0_9, %c0_10], %27 {strides = array<i32>} : memref<7x8x128xbf16, #tpu.memory_space<vmem>>, vector<1x8x128xbf16>,
    %c1 = arith.constant 1 : index
    %c0_11 = arith.constant 0 : index
    %c0_12 = arith.constant 0 : index
    %28 = vector.load %arg1[%c1, %c0_11, %c0_12] : memref<7x8x512xf32, #tpu.memory_space<vmem>>, vector<1x8x512xf32>
    %29 = vector.shape_cast %28 : vector<1x8x512xf32> to vector<8x512xf32>
    %30 = arith.truncf %23 : vector<8x128xf32> to vector<8x128xbf16>
    %cst_13 = arith.constant dense<0.000000e+00> : vector<8x512xf32>
    %31 = tpu.matmul %30, %2, %cst_13 {dimension_numbers = #tpu.dot_dimension_numbers<[1], [0], [0], [1], [0, 0, 1, 1], [], []>} : vector<8x128xbf16>, vector<128x512xbf16>, vector<8x512xf32> -> vector<8x512xf32>
    %32 = arith.addf %29, %31 : vector<8x512xf32>
    %33 = vector.extract_strided_slice %32 {offsets = [0, 0], sizes = [8, 384], strides = [1, 1]} : vector<8x512xf32> to vector<8x384xf32>
    %34 = arith.negf %33 : vector<8x384xf32>
    %35 = math.exp %34 : vector<8x384xf32>
    %cst_14 = arith.constant 1.000000e+00 : f32
    %36 = vector.broadcast %cst_14 : f32 to vector<8x384xf32>
    %37 = arith.addf %36, %35 : vector<8x384xf32>
    %38 = arith.divf %36, %37 : vector<8x384xf32>
    %39 = vector.extract_strided_slice %38 {offsets = [0, 0], sizes = [8, 128], strides = [1, 1]} : vector<8x384xf32> to vector<8x128xf32>
    %40 = vector.extract_strided_slice %38 {offsets = [0, 128], sizes = [8, 128], strides = [1, 1]} : vector<8x384xf32> to vector<8x128xf32>
    %41 = vector.extract_strided_slice %38 {offsets = [0, 256], sizes = [8, 128], strides = [1, 1]} : vector<8x384xf32> to vector<8x128xf32>
    %42 = vector.extract_strided_slice %32 {offsets = [0, 384], sizes = [8, 128], strides = [1, 1]} : vector<8x512xf32> to vector<8x128xf32>
    %43 = math.tanh %42 : vector<8x128xf32>
    %44 = arith.mulf %40, %21 : vector<8x128xf32>
    %45 = arith.mulf %39, %43 : vector<8x128xf32>
    %46 = arith.addf %44, %45 : vector<8x128xf32>
    %47 = math.tanh %46 : vector<8x128xf32>
    %48 = arith.mulf %41, %47 : vector<8x128xf32>
    %49 = arith.truncf %48 : vector<8x128xf32> to vector<8x128xbf16>
    %c1_15 = arith.constant 1 : index
    %c0_16 = arith.constant 0 : index
    %c0_17 = arith.constant 0 : index
    %50 = vector.load %arg3[%c1_15, %c0_16, %c0_17] : memref<7x8x128xbf16, #tpu.memory_space<vmem>>, vector<1x8x128xbf16>
    %51 = vector.shape_cast %50 : vector<1x8x128xbf16> to vector<8x128xbf16>
    %52 = vector.shape_cast %49 : vector<8x128xbf16> to vector<1x8x128xbf16>
    tpu.vector_store %arg3[%c1_15, %c0_16, %c0_17], %52 {strides = array<i32>} : memref<7x8x128xbf16, #tpu.memory_space<vmem>>, vector<1x8x128xbf16>,
    %c2 = arith.constant 2 : index
    %c0_18 = arith.constant 0 : index
    %c0_19 = arith.constant 0 : index
    %53 = vector.load %arg1[%c2, %c0_18, %c0_19] : memref<7x8x512xf32, #tpu.memory_space<vmem>>, vector<1x8x512xf32>
    %54 = vector.shape_cast %53 : vector<1x8x512xf32> to vector<8x512xf32>
    %55 = arith.truncf %48 : vector<8x128xf32> to vector<8x128xbf16>
    %cst_20 = arith.constant dense<0.000000e+00> : vector<8x512xf32>
    %56 = tpu.matmul %55, %2, %cst_20 {dimension_numbers = #tpu.dot_dimension_numbers<[1], [0], [0], [1], [0, 0, 1, 1], [], []>} : vector<8x128xbf16>, vector<128x512xbf16>, vector<8x512xf32> -> vector<8x512xf32>
    %57 = arith.addf %54, %56 : vector<8x512xf32>
    %58 = vector.extract_strided_slice %57 {offsets = [0, 0], sizes = [8, 384], strides = [1, 1]} : vector<8x512xf32> to vector<8x384xf32>
    %59 = arith.negf %58 : vector<8x384xf32>
    %60 = math.exp %59 : vector<8x384xf32>
    %cst_21 = arith.constant 1.000000e+00 : f32
    %61 = vector.broadcast %cst_21 : f32 to vector<8x384xf32>
    %62 = arith.addf %61, %60 : vector<8x384xf32>
    %63 = arith.divf %61, %62 : vector<8x384xf32>
    %64 = vector.extract_strided_slice %63 {offsets = [0, 0], sizes = [8, 128], strides = [1, 1]} : vector<8x384xf32> to vector<8x128xf32>
    %65 = vector.extract_strided_slice %63 {offsets = [0, 128], sizes = [8, 128], strides = [1, 1]} : vector<8x384xf32> to vector<8x128xf32>
    %66 = vector.extract_strided_slice %63 {offsets = [0, 256], sizes = [8, 128], strides = [1, 1]} : vector<8x384xf32> to vector<8x128xf32>
    %67 = vector.extract_strided_slice %57 {offsets = [0, 384], sizes = [8, 128], strides = [1, 1]} : vector<8x512xf32> to vector<8x128xf32>
    %68 = math.tanh %67 : vector<8x128xf32>
    %69 = arith.mulf %65, %46 : vector<8x128xf32>
    %70 = arith.mulf %64, %68 : vector<8x128xf32>
    %71 = arith.addf %69, %70 : vector<8x128xf32>
    %72 = math.tanh %71 : vector<8x128xf32>
    %73 = arith.mulf %66, %72 : vector<8x128xf32>
    %74 = arith.truncf %73 : vector<8x128xf32> to vector<8x128xbf16>
    %c2_22 = arith.constant 2 : index
    %c0_23 = arith.constant 0 : index
    %c0_24 = arith.constant 0 : index
    %75 = vector.load %arg3[%c2_22, %c0_23, %c0_24] : memref<7x8x128xbf16, #tpu.memory_space<vmem>>, vector<1x8x128xbf16>
    %76 = vector.shape_cast %75 : vector<1x8x128xbf16> to vector<8x128xbf16>
    %77 = vector.shape_cast %74 : vector<8x128xbf16> to vector<1x8x128xbf16>
    tpu.vector_store %arg3[%c2_22, %c0_23, %c0_24], %77 {strides = array<i32>} : memref<7x8x128xbf16, #tpu.memory_space<vmem>>, vector<1x8x128xbf16>,
    %c3 = arith.constant 3 : index
    %c0_25 = arith.constant 0 : index
    %c0_26 = arith.constant 0 : index
    %78 = vector.load %arg1[%c3, %c0_25, %c0_26] : memref<7x8x512xf32, #tpu.memory_space<vmem>>, vector<1x8x512xf32>
    %79 = vector.shape_cast %78 : vector<1x8x512xf32> to vector<8x512xf32>
    %80 = arith.truncf %73 : vector<8x128xf32> to vector<8x128xbf16>
    %cst_27 = arith.constant dense<0.000000e+00> : vector<8x512xf32>
    %81 = tpu.matmul %80, %2, %cst_27 {dimension_numbers = #tpu.dot_dimension_numbers<[1], [0], [0], [1], [0, 0, 1, 1], [], []>} : vector<8x128xbf16>, vector<128x512xbf16>, vector<8x512xf32> -> vector<8x512xf32>
    %82 = arith.addf %79, %81 : vector<8x512xf32>
    %83 = vector.extract_strided_slice %82 {offsets = [0, 0], sizes = [8, 384], strides = [1, 1]} : vector<8x512xf32> to vector<8x384xf32>
    %84 = arith.negf %83 : vector<8x384xf32>
    %85 = math.exp %84 : vector<8x384xf32>
    %cst_28 = arith.constant 1.000000e+00 : f32
    %86 = vector.broadcast %cst_28 : f32 to vector<8x384xf32>
    %87 = arith.addf %86, %85 : vector<8x384xf32>
    %88 = arith.divf %86, %87 : vector<8x384xf32>
    %89 = vector.extract_strided_slice %88 {offsets = [0, 0], sizes = [8, 128], strides = [1, 1]} : vector<8x384xf32> to vector<8x128xf32>
    %90 = vector.extract_strided_slice %88 {offsets = [0, 128], sizes = [8, 128], strides = [1, 1]} : vector<8x384xf32> to vector<8x128xf32>
    %91 = vector.extract_strided_slice %88 {offsets = [0, 256], sizes = [8, 128], strides = [1, 1]} : vector<8x384xf32> to vector<8x128xf32>
    %92 = vector.extract_strided_slice %82 {offsets = [0, 384], sizes = [8, 128], strides = [1, 1]} : vector<8x512xf32> to vector<8x128xf32>
    %93 = math.tanh %92 : vector<8x128xf32>
    %94 = arith.mulf %90, %71 : vector<8x128xf32>
    %95 = arith.mulf %89, %93 : vector<8x128xf32>
    %96 = arith.addf %94, %95 : vector<8x128xf32>
    %97 = math.tanh %96 : vector<8x128xf32>
    %98 = arith.mulf %91, %97 : vector<8x128xf32>
    %99 = arith.truncf %98 : vector<8x128xf32> to vector<8x128xbf16>
    %c3_29 = arith.constant 3 : index
    %c0_30 = arith.constant 0 : index
    %c0_31 = arith.constant 0 : index
    %100 = vector.load %arg3[%c3_29, %c0_30, %c0_31] : memref<7x8x128xbf16, #tpu.memory_space<vmem>>, vector<1x8x128xbf16>
    %101 = vector.shape_cast %100 : vector<1x8x128xbf16> to vector<8x128xbf16>
    %102 = vector.shape_cast %99 : vector<8x128xbf16> to vector<1x8x128xbf16>
    tpu.vector_store %arg3[%c3_29, %c0_30, %c0_31], %102 {strides = array<i32>} : memref<7x8x128xbf16, #tpu.memory_space<vmem>>, vector<1x8x128xbf16>,
    %c4 = arith.constant 4 : index
    %c0_32 = arith.constant 0 : index
    %c0_33 = arith.constant 0 : index
    %103 = vector.load %arg1[%c4, %c0_32, %c0_33] : memref<7x8x512xf32, #tpu.memory_space<vmem>>, vector<1x8x512xf32>
    %104 = vector.shape_cast %103 : vector<1x8x512xf32> to vector<8x512xf32>
    %105 = arith.truncf %98 : vector<8x128xf32> to vector<8x128xbf16>
    %cst_34 = arith.constant dense<0.000000e+00> : vector<8x512xf32>
    %106 = tpu.matmul %105, %2, %cst_34 {dimension_numbers = #tpu.dot_dimension_numbers<[1], [0], [0], [1], [0, 0, 1, 1], [], []>} : vector<8x128xbf16>, vector<128x512xbf16>, vector<8x512xf32> -> vector<8x512xf32>
    %107 = arith.addf %104, %106 : vector<8x512xf32>
    %108 = vector.extract_strided_slice %107 {offsets = [0, 0], sizes = [8, 384], strides = [1, 1]} : vector<8x512xf32> to vector<8x384xf32>
    %109 = arith.negf %108 : vector<8x384xf32>
    %110 = math.exp %109 : vector<8x384xf32>
    %cst_35 = arith.constant 1.000000e+00 : f32
    %111 = vector.broadcast %cst_35 : f32 to vector<8x384xf32>
    %112 = arith.addf %111, %110 : vector<8x384xf32>
    %113 = arith.divf %111, %112 : vector<8x384xf32>
    %114 = vector.extract_strided_slice %113 {offsets = [0, 0], sizes = [8, 128], strides = [1, 1]} : vector<8x384xf32> to vector<8x128xf32>
    %115 = vector.extract_strided_slice %113 {offsets = [0, 128], sizes = [8, 128], strides = [1, 1]} : vector<8x384xf32> to vector<8x128xf32>
    %116 = vector.extract_strided_slice %113 {offsets = [0, 256], sizes = [8, 128], strides = [1, 1]} : vector<8x384xf32> to vector<8x128xf32>
    %117 = vector.extract_strided_slice %107 {offsets = [0, 384], sizes = [8, 128], strides = [1, 1]} : vector<8x512xf32> to vector<8x128xf32>
    %118 = math.tanh %117 : vector<8x128xf32>
    %119 = arith.mulf %115, %96 : vector<8x128xf32>
    %120 = arith.mulf %114, %118 : vector<8x128xf32>
    %121 = arith.addf %119, %120 : vector<8x128xf32>
    %122 = math.tanh %121 : vector<8x128xf32>
    %123 = arith.mulf %116, %122 : vector<8x128xf32>
    %124 = arith.truncf %123 : vector<8x128xf32> to vector<8x128xbf16>
    %c4_36 = arith.constant 4 : index
    %c0_37 = arith.constant 0 : index
    %c0_38 = arith.constant 0 : index
    %125 = vector.load %arg3[%c4_36, %c0_37, %c0_38] : memref<7x8x128xbf16, #tpu.memory_space<vmem>>, vector<1x8x128xbf16>
    %126 = vector.shape_cast %125 : vector<1x8x128xbf16> to vector<8x128xbf16>
    %127 = vector.shape_cast %124 : vector<8x128xbf16> to vector<1x8x128xbf16>
    tpu.vector_store %arg3[%c4_36, %c0_37, %c0_38], %127 {strides = array<i32>} : memref<7x8x128xbf16, #tpu.memory_space<vmem>>, vector<1x8x128xbf16>,
    %c5 = arith.constant 5 : index
    %c0_39 = arith.constant 0 : index
    %c0_40 = arith.constant 0 : index
    %128 = vector.load %arg1[%c5, %c0_39, %c0_40] : memref<7x8x512xf32, #tpu.memory_space<vmem>>, vector<1x8x512xf32>
    %129 = vector.shape_cast %128 : vector<1x8x512xf32> to vector<8x512xf32>
    %130 = arith.truncf %123 : vector<8x128xf32> to vector<8x128xbf16>
    %cst_41 = arith.constant dense<0.000000e+00> : vector<8x512xf32>
    %131 = tpu.matmul %130, %2, %cst_41 {dimension_numbers = #tpu.dot_dimension_numbers<[1], [0], [0], [1], [0, 0, 1, 1], [], []>} : vector<8x128xbf16>, vector<128x512xbf16>, vector<8x512xf32> -> vector<8x512xf32>
    %132 = arith.addf %129, %131 : vector<8x512xf32>
    %133 = vector.extract_strided_slice %132 {offsets = [0, 0], sizes = [8, 384], strides = [1, 1]} : vector<8x512xf32> to vector<8x384xf32>
    %134 = arith.negf %133 : vector<8x384xf32>
    %135 = math.exp %134 : vector<8x384xf32>
    %cst_42 = arith.constant 1.000000e+00 : f32
    %136 = vector.broadcast %cst_42 : f32 to vector<8x384xf32>
    %137 = arith.addf %136, %135 : vector<8x384xf32>
    %138 = arith.divf %136, %137 : vector<8x384xf32>
    %139 = vector.extract_strided_slice %138 {offsets = [0, 0], sizes = [8, 128], strides = [1, 1]} : vector<8x384xf32> to vector<8x128xf32>
    %140 = vector.extract_strided_slice %138 {offsets = [0, 128], sizes = [8, 128], strides = [1, 1]} : vector<8x384xf32> to vector<8x128xf32>
    %141 = vector.extract_strided_slice %138 {offsets = [0, 256], sizes = [8, 128], strides = [1, 1]} : vector<8x384xf32> to vector<8x128xf32>
    %142 = vector.extract_strided_slice %132 {offsets = [0, 384], sizes = [8, 128], strides = [1, 1]} : vector<8x512xf32> to vector<8x128xf32>
    %143 = math.tanh %142 : vector<8x128xf32>
    %144 = arith.mulf %140, %121 : vector<8x128xf32>
    %145 = arith.mulf %139, %143 : vector<8x128xf32>
    %146 = arith.addf %144, %145 : vector<8x128xf32>
    %147 = math.tanh %146 : vector<8x128xf32>
    %148 = arith.mulf %141, %147 : vector<8x128xf32>
    %149 = arith.truncf %148 : vector<8x128xf32> to vector<8x128xbf16>
    %c5_43 = arith.constant 5 : index
    %c0_44 = arith.constant 0 : index
    %c0_45 = arith.constant 0 : index
    %150 = vector.load %arg3[%c5_43, %c0_44, %c0_45] : memref<7x8x128xbf16, #tpu.memory_space<vmem>>, vector<1x8x128xbf16>
    %151 = vector.shape_cast %150 : vector<1x8x128xbf16> to vector<8x128xbf16>
    %152 = vector.shape_cast %149 : vector<8x128xbf16> to vector<1x8x128xbf16>
    tpu.vector_store %arg3[%c5_43, %c0_44, %c0_45], %152 {strides = array<i32>} : memref<7x8x128xbf16, #tpu.memory_space<vmem>>, vector<1x8x128xbf16>,
    %c6 = arith.constant 6 : index
    %c0_46 = arith.constant 0 : index
    %c0_47 = arith.constant 0 : index
    %153 = vector.load %arg1[%c6, %c0_46, %c0_47] : memref<7x8x512xf32, #tpu.memory_space<vmem>>, vector<1x8x512xf32>
    %154 = vector.shape_cast %153 : vector<1x8x512xf32> to vector<8x512xf32>
    %155 = arith.truncf %148 : vector<8x128xf32> to vector<8x128xbf16>
    %cst_48 = arith.constant dense<0.000000e+00> : vector<8x512xf32>
    %156 = tpu.matmul %155, %2, %cst_48 {dimension_numbers = #tpu.dot_dimension_numbers<[1], [0], [0], [1], [0, 0, 1, 1], [], []>} : vector<8x128xbf16>, vector<128x512xbf16>, vector<8x512xf32> -> vector<8x512xf32>
    %157 = arith.addf %154, %156 : vector<8x512xf32>
    %158 = vector.extract_strided_slice %157 {offsets = [0, 0], sizes = [8, 384], strides = [1, 1]} : vector<8x512xf32> to vector<8x384xf32>
    %159 = arith.negf %158 : vector<8x384xf32>
    %160 = math.exp %159 : vector<8x384xf32>
    %cst_49 = arith.constant 1.000000e+00 : f32
    %161 = vector.broadcast %cst_49 : f32 to vector<8x384xf32>
    %162 = arith.addf %161, %160 : vector<8x384xf32>
    %163 = arith.divf %161, %162 : vector<8x384xf32>
    %164 = vector.extract_strided_slice %163 {offsets = [0, 0], sizes = [8, 128], strides = [1, 1]} : vector<8x384xf32> to vector<8x128xf32>
    %165 = vector.extract_strided_slice %163 {offsets = [0, 128], sizes = [8, 128], strides = [1, 1]} : vector<8x384xf32> to vector<8x128xf32>
    %166 = vector.extract_strided_slice %163 {offsets = [0, 256], sizes = [8, 128], strides = [1, 1]} : vector<8x384xf32> to vector<8x128xf32>
    %167 = vector.extract_strided_slice %157 {offsets = [0, 384], sizes = [8, 128], strides = [1, 1]} : vector<8x512xf32> to vector<8x128xf32>
    %168 = math.tanh %167 : vector<8x128xf32>
    %169 = arith.mulf %165, %146 : vector<8x128xf32>
    %170 = arith.mulf %164, %168 : vector<8x128xf32>
    %171 = arith.addf %169, %170 : vector<8x128xf32>
    %172 = math.tanh %171 : vector<8x128xf32>
    %173 = arith.mulf %166, %172 : vector<8x128xf32>
    %174 = arith.truncf %173 : vector<8x128xf32> to vector<8x128xbf16>
    %c6_50 = arith.constant 6 : index
    %c0_51 = arith.constant 0 : index
    %c0_52 = arith.constant 0 : index
    %175 = vector.load %arg3[%c6_50, %c0_51, %c0_52] : memref<7x8x128xbf16, #tpu.memory_space<vmem>>, vector<1x8x128xbf16>
    %176 = vector.shape_cast %175 : vector<1x8x128xbf16> to vector<8x128xbf16>
    %177 = vector.shape_cast %174 : vector<8x128xbf16> to vector<1x8x128xbf16>
    tpu.vector_store %arg3[%c6_50, %c0_51, %c0_52], %177 {strides = array<i32>} : memref<7x8x128xbf16, #tpu.memory_space<vmem>>, vector<1x8x128xbf16>,
    return
  }
}

module attributes {stable_mosaic.version = 11 : i64} {
  func.func @vocab_proj_kernel(%arg0: i32, %arg1: memref<56x128xbf16, #tpu.memory_space<vmem>>, %arg2: memref<128x128xbf16, #tpu.memory_space<vmem>>, %arg3: memref<1x128xf32, #tpu.memory_space<vmem>>, %arg4: memref<56x128xf32, #tpu.memory_space<vmem>>) attributes {dimension_semantics = [#tpu.dimension_semantics<parallel>], iteration_bounds = array<i64: 1>, scalar_prefetch = 0 : i64, scratch_operands = 0 : i64, tpu.core_type = #tpu.core_type<tc>, window_params = [{pipeline_mode = #tpu.pipeline_mode<synchronous>, transform_indices = @transform_0, window_bounds = array<i64: 56, 128>}, {transform_indices = @transform_1, window_bounds = array<i64: 128, 128>}, {transform_indices = @transform_2, window_bounds = array<i64: 1, 128>}, {transform_indices = @transform_3, window_bounds = array<i64: 56, 128>}]} {
    %c0 = arith.constant 0 : index
    %c0_0 = arith.constant 0 : index
    %0 = vector.load %arg1[%c0, %c0_0] : memref<56x128xbf16, #tpu.memory_space<vmem>>, vector<56x128xbf16>
    %c0_1 = arith.constant 0 : index
    %c0_2 = arith.constant 0 : index
    %1 = vector.load %arg2[%c0_1, %c0_2] : memref<128x128xbf16, #tpu.memory_space<vmem>>, vector<128x128xbf16>
    %cst = arith.constant dense<0.000000e+00> : vector<56x128xf32>
    %2 = tpu.matmul %0, %1, %cst {dimension_numbers = #tpu.dot_dimension_numbers<[1], [0], [0], [1], [0, 0, 1, 1], [], []>} : vector<56x128xbf16>, vector<128x128xbf16>, vector<56x128xf32> -> vector<56x128xf32>
    %c0_3 = arith.constant 0 : index
    %c0_4 = arith.constant 0 : index
    %3 = vector.load %arg3[%c0_3, %c0_4] : memref<1x128xf32, #tpu.memory_space<vmem>>, vector<1x128xf32>
    %4 = vector.broadcast %3 : vector<1x128xf32> to vector<56x128xf32>
    %5 = arith.addf %2, %4 : vector<56x128xf32>
    %c0_5 = arith.constant 0 : index
    %c0_6 = arith.constant 0 : index
    %6 = vector.load %arg4[%c0_5, %c0_6] : memref<56x128xf32, #tpu.memory_space<vmem>>, vector<56x128xf32>
    tpu.vector_store %arg4[%c0_5, %c0_6], %5 {strides = array<i32>} : memref<56x128xf32, #tpu.memory_space<vmem>>, vector<56x128xf32>,
    return
  }
  func.func @transform_0(%arg0: i32) -> (i32, i32) {
    %c0_i32 = arith.constant 0 : i32
    %c0_i32_0 = arith.constant 0 : i32
    %c0_i32_1 = arith.constant 0 : i32
    return %c0_i32, %c0_i32_0 : i32, i32
  }
  func.func @transform_1(%arg0: i32) -> (i32, i32) {
    %c0_i32 = arith.constant 0 : i32
    %c0_i32_0 = arith.constant 0 : i32
    return %c0_i32, %arg0 : i32, i32
  }
  func.func @transform_2(%arg0: i32) -> (i32, i32) {
    %c0_i32 = arith.constant 0 : i32
    %c0_i32_0 = arith.constant 0 : i32
    return %c0_i32, %arg0 : i32, i32
  }
  func.func @transform_3(%arg0: i32) -> (i32, i32) {
    %c0_i32 = arith.constant 0 : i32
    %c0_i32_0 = arith.constant 0 : i32
    return %c0_i32, %arg0 : i32, i32
  }
}

</mosaic_0001>

<llo_original>
// kernel: simple_decoder_forward.5
$region0: #{simple_decoder_forward.5}
  #allocation0 [shape = 'u32[]', space=smem, size = 0x4, offset = 0x4, fixed_abs, tag = 'smem constant byte address 0x4 - core index']
  #allocation1 [shape = 'u32[144,128]{1,0:T(1,128)}', space=vmem, size = 0x12000, scoped, tag = 'internal scratch']
  %s0 = inlined_call_operand.vmem [shape: bf16[56,128], index: 0, kind: input, shape index: {}]
  %s1 = inlined_call_operand.vmem [shape: bf16[128,512], index: 1, kind: input, shape index: {}]
  %s2 = inlined_call_operand.vmem [shape: f32[1,512], index: 2, kind: input, shape index: {}]
  %s3 = inlined_call_operand.vmem [shape: f32[56,512], index: 3, kind: output, shape index: {}]
  %s4 = sld [smem:[#allocation0]]
  $region120: #{simple_decoder_forward.5} parent=0
    _
  %s6 = ssub.s32 1, %s4
  %s7 = scalar_select 0, %s6, %s4
  $region1: #{simple_decoder_forward.5} parent=0
    #allocation2 [shape = 'u8[65536]{0}', space=vmem, size = 0x10000, scoped, tag = 'input window, operand 1']
    #allocation3 [shape = 'u8[57344]{0}', space=vmem, size = 0xe000, scoped, tag = 'output window, operand 0']
    loop: start=0, step=1, limit=6
    $region2: #{simple_decoder_forward.5} parent=1 // loop_pre_header
      _
    $region3: #{simple_decoder_forward.5} parent=1 // loop_header
      %s9 = sphi 0, %s13
      %p10 = scmp.ge.s32.totalorder %s9, 6
      %s17 = sphi 0, %s17
      %s19 = sphi 0, %s17
      %s20 = sphi 0, %s19
      %s34 = sphi 0, %s20
      %s40 = sphi 0, %s42
      %s43 = sphi 0, %s40
      %s44 = sphi 0, %s43
      %s60 = sphi 0, %s44
      %s66 = sphi 0, %s68
      %s69 = sphi 0, %s66
      %s70 = sphi 0, %s69
      %s86 = sphi 0, %s70
      %s92 = sphi 0, %s94
      %s95 = sphi 0, %s92
      %s96 = sphi 0, %s95
      %s112 = sphi 0, %s96
    $region4: #{simple_decoder_forward.5} parent=1 // loop_header_branch
      %12 = sbr.rel (%p10) target = $region8
    $region5: #{simple_decoder_forward.5} parent=1 // loop_body
      %s14 = ssub.s32 %s9, 1
      %s15 = ssub.s32 %s9, 2
      %s16 = sadd.s32 %s9, 1
      %s18 = sadd.s32 %s17, 1
      %p21 = scmp.eq.s32.totalorder %s9, 3
      %p22 = scmp.ne.s32.totalorder %s17, %s19
      %p23 = scmp.eq.s32.totalorder %s9, 0
      %p24 = por %p22, %p23
      %p25 = scmp.ne.s32.totalorder %s17, %s19
      %p26 = scmp.eq.s32.totalorder %s14, 3
      %p27 = por %p25, %p26
      %p28 = scmp.ne.s32.totalorder %s19, %s20
      %p29 = scmp.eq.s32.totalorder %s14, 0
      %p30 = por %p28, %p29
      %p31 = scmp.ne.s32.totalorder %s19, %s20
      %p32 = scmp.eq.s32.totalorder %s15, 3
      %p33 = por %p31, %p32
      %p35 = scmp.ne.s32.totalorder %s20, %s34
      %p36 = scmp.eq.s32.totalorder %s15, 0
      %p37 = por %p35, %p36
      %s38 = ssub.s32 %s9, %s16
      %p39 = scmp.eq.s32.totalorder %s38, 0
      %s41 = sadd.s32 %s40, 1
      %s42 = scalar_select %p39, %s40, %s41
      %p45 = pneg %p39
      %p46 = scmp.eq.s32.totalorder %s9, 3
      %p47 = por %p45, %p46
      %p48 = scmp.ne.s32.totalorder %s40, %s43
      %p49 = scmp.eq.s32.totalorder %s9, 0
      %p50 = por %p48, %p49
      %p51 = scmp.ne.s32.totalorder %s40, %s43
      %p52 = scmp.eq.s32.totalorder %s14, 3
      %p53 = por %p51, %p52
      %p54 = scmp.ne.s32.totalorder %s43, %s44
      %p55 = scmp.eq.s32.totalorder %s14, 0
      %p56 = por %p54, %p55
      %p57 = scmp.ne.s32.totalorder %s43, %s44
      %p58 = scmp.eq.s32.totalorder %s15, 3
      %p59 = por %p57, %p58
      %p61 = scmp.ne.s32.totalorder %s44, %s60
      %p62 = scmp.eq.s32.totalorder %s15, 0
      %p63 = por %p61, %p62
      %s64 = ssub.s32 %s9, %s16
      %p65 = scmp.eq.s32.totalorder %s64, 0
      %s67 = sadd.s32 %s66, 1
      %s68 = scalar_select %p65, %s66, %s67
      %p71 = pneg %p65
      %p72 = scmp.eq.s32.totalorder %s9, 3
      %p73 = por %p71, %p72
      %p74 = scmp.ne.s32.totalorder %s66, %s69
      %p75 = scmp.eq.s32.totalorder %s9, 0
      %p76 = por %p74, %p75
      %p77 = scmp.ne.s32.totalorder %s66, %s69
      %p78 = scmp.eq.s32.totalorder %s14, 3
      %p79 = por %p77, %p78
      %p80 = scmp.ne.s32.totalorder %s69, %s70
      %p81 = scmp.eq.s32.totalorder %s14, 0
      %p82 = por %p80, %p81
      %p83 = scmp.ne.s32.totalorder %s69, %s70
      %p84 = scmp.eq.s32.totalorder %s15, 3
      %p85 = por %p83, %p84
      %p87 = scmp.ne.s32.totalorder %s70, %s86
      %p88 = scmp.eq.s32.totalorder %s15, 0
      %p89 = por %p87, %p88
      %s90 = ssub.s32 %s9, %s16
      %p91 = scmp.eq.s32.totalorder %s90, 0
      %s93 = sadd.s32 %s92, 1
      %s94 = scalar_select %p91, %s92, %s93
      %p97 = pneg %p91
      %p98 = scmp.eq.s32.totalorder %s9, 3
      %p99 = por %p97, %p98
      %p100 = scmp.ne.s32.totalorder %s92, %s95
      %p101 = scmp.eq.s32.totalorder %s9, 0
      %p102 = por %p100, %p101
      %p103 = scmp.ne.s32.totalorder %s92, %s95
      %p104 = scmp.eq.s32.totalorder %s14, 3
      %p105 = por %p103, %p104
      %p106 = scmp.ne.s32.totalorder %s95, %s96
      %p107 = scmp.eq.s32.totalorder %s14, 0
      %p108 = por %p106, %p107
      %p109 = scmp.ne.s32.totalorder %s95, %s96
      %p110 = scmp.eq.s32.totalorder %s15, 3
      %p111 = por %p109, %p110
      %p113 = scmp.ne.s32.totalorder %s96, %s112
      %p114 = scmp.eq.s32.totalorder %s15, 0
      %p115 = por %p113, %p114
      %p116 = scmp.le.s32.totalorder 1, %s9
      %p117 = scmp.lt.s32.totalorder %s9, 5
      %p118 = pnand %p116, %p117
      %p119 = pneg %p118
      // Predicated region
      $region9: #{simple_decoder_forward.5} parent=5 // pred_check
        _
      $region10: #{simple_decoder_forward.5} parent=5 // pred_check_branch
        %121 = sbr.rel (%p118) target = $region12
      $region11: #{simple_decoder_forward.5} parent=5 // pred_region
        %s122 = ssub.s32 %s9, 1
        // Predicated region
        $region13: #{simple_decoder_forward.5} parent=11 // pred_check
          %p123 = pneg %p30
        $region14: #{simple_decoder_forward.5} parent=11 // pred_check_branch
          %125 = sbr.rel (%p123) target = $region16
        $region15: #{simple_decoder_forward.5} parent=11 // pred_region
          _
        $region16: #{simple_decoder_forward.5} parent=11 // pred_fallthru
          _
      $region12: #{simple_decoder_forward.5} parent=5 // pred_fallthru
        _
      %p126 = scmp.lt.s32.totalorder %s9, 4
      // Predicated region
      $region17: #{simple_decoder_forward.5} parent=5 // pred_check
        %p127 = pneg %p126
      $region18: #{simple_decoder_forward.5} parent=5 // pred_check_branch
        %129 = sbr.rel (%p127) target = $region20
      $region19: #{simple_decoder_forward.5} parent=5 // pred_region
        // Predicated region
        $region21: #{simple_decoder_forward.5} parent=19 // pred_check
          %p130 = pneg %p50
        $region22: #{simple_decoder_forward.5} parent=19 // pred_check_branch
          %132 = sbr.rel (%p130) target = $region24
        $region23: #{simple_decoder_forward.5} parent=19 // pred_region
          %s133 = sand.u32 %s40, 1
          %s134 = sand.u32 %s40, 1
          %s135 = smul.addr %s134, 64
          %s136 = scalar_lea.vmem [#allocation2], %s135
          %s137 = smul.addr %s9, 4
          %s138 = scalar_lea.vmem %s1, %s137
          // Predicated region
          $region25: #{simple_decoder_forward.5} parent=23 // pred_check
            _
          $region26: #{simple_decoder_forward.5} parent=23 // pred_check_branch
            %140 = sbr.rel (0) target = $region28
          $region27: #{simple_decoder_forward.5} parent=23 // pred_region
            // Predicated region
            $region29: #{simple_decoder_forward.5} parent=27 // pred_check
              _
            $region30: #{simple_decoder_forward.5} parent=27 // pred_check_branch
              %142 = sbr.rel target = $region32
            $region31: #{simple_decoder_forward.5} parent=27 // pred_region
              // Predicated region
              $region44: #{simple_decoder_forward.5} parent=31 // pred_check
                _
              $region45: #{simple_decoder_forward.5} parent=31 // pred_check_branch
                %188 = sbr.rel (0) target = $region47
              $region46: #{simple_decoder_forward.5} parent=31 // pred_region
                loop: start=0, step=1, limit=1
                $region48: #{simple_decoder_forward.5} parent=46 // loop_pre_header
                  _
                $region49: #{simple_decoder_forward.5} parent=46 // loop_header
                  %s190 = sphi 0, %s194
                  %p191 = scmp.ge.s32.totalorder %s190, 1
                  %s195 = sphi %s138, %s138
                  %s196 = sphi %s136, %s136
                $region50: #{simple_decoder_forward.5} parent=46 // loop_header_branch
                  %193 = sbr.rel (%p191) target = $region54
                $region51: #{simple_decoder_forward.5} parent=46 // loop_body
                  _
                $region52: #{simple_decoder_forward.5} parent=46 // loop_footer
                  %s194 = sadd.s32 1, %s190
                $region53: #{simple_decoder_forward.5} parent=46 // loop_footer_branch
                  %189 = sbr.rel target = $region49
                $region54: #{simple_decoder_forward.5} parent=46 // loop_exit
                  _
                %s198 = ssub.s32 16, 1
                loop: start=0, step=1, limit=1
                $region55: #{simple_decoder_forward.5} parent=46 // loop_pre_header
                  _
                $region56: #{simple_decoder_forward.5} parent=46 // loop_header
                  %s200 = sphi 0, %s204
                  %p201 = scmp.ge.s32.totalorder %s200, 1
                  %s205 = sphi %s138, %s138
                  %s206 = sphi %s136, %s136
                $region57: #{simple_decoder_forward.5} parent=46 // loop_header_branch
                  %203 = sbr.rel (%p201) target = $region61
                $region58: #{simple_decoder_forward.5} parent=46 // loop_body
                  %v207 = vld [vmem:[%s205] sm:%s198]
                  %208 = vst [vmem:[%s206] sm:%s198] %v207
                  %v209 = vld [vmem:[%s205 + $0x10] sm:%s198]
                  %210 = vst [vmem:[%s206 + $0x4] sm:%s198] %v209
                  %v211 = vld [vmem:[%s205 + $0x20] sm:%s198]
                  %212 = vst [vmem:[%s206 + $0x8] sm:%s198] %v211
                  %v213 = vld [vmem:[%s205 + $0x30] sm:%s198]
                  %214 = vst [vmem:[%s206 + $0xc] sm:%s198] %v213
                  %v215 = vld [vmem:[%s205 + $0x40] sm:%s198]
                  %216 = vst [vmem:[%s206 + $0x10] sm:%s198] %v215
                  %v217 = vld [vmem:[%s205 + $0x50] sm:%s198]
                  %218 = vst [vmem:[%s206 + $0x14] sm:%s198] %v217
                  %v219 = vld [vmem:[%s205 + $0x60] sm:%s198]
                  %220 = vst [vmem:[%s206 + $0x18] sm:%s198] %v219
                  %v221 = vld [vmem:[%s205 + $0x70] sm:%s198]
                  %222 = vst [vmem:[%s206 + $0x1c] sm:%s198] %v221
                  %v223 = vld [vmem:[%s205 + $0x80] sm:%s198]
                  %224 = vst [vmem:[%s206 + $0x20] sm:%s198] %v223
                  %v225 = vld [vmem:[%s205 + $0x90] sm:%s198]
                  %226 = vst [vmem:[%s206 + $0x24] sm:%s198] %v225
                  %v227 = vld [vmem:[%s205 + $0xa0] sm:%s198]
                  %228 = vst [vmem:[%s206 + $0x28] sm:%s198] %v227
                  %v229 = vld [vmem:[%s205 + $0xb0] sm:%s198]
                  %230 = vst [vmem:[%s206 + $0x2c] sm:%s198] %v229
                  %v231 = vld [vmem:[%s205 + $0xc0] sm:%s198]
                  %232 = vst [vmem:[%s206 + $0x30] sm:%s198] %v231
                  %v233 = vld [vmem:[%s205 + $0xd0] sm:%s198]
                  %234 = vst [vmem:[%s206 + $0x34] sm:%s198] %v233
                  %v235 = vld [vmem:[%s205 + $0xe0] sm:%s198]
                  %236 = vst [vmem:[%s206 + $0x38] sm:%s198] %v235
                  %v237 = vld [vmem:[%s205 + $0xf0] sm:%s198]
                  %238 = vst [vmem:[%s206 + $0x3c] sm:%s198] %v237
                $region59: #{simple_decoder_forward.5} parent=46 // loop_footer
                  %s204 = sadd.s32 1, %s200
                $region60: #{simple_decoder_forward.5} parent=46 // loop_footer_branch
                  %199 = sbr.rel target = $region56
                $region61: #{simple_decoder_forward.5} parent=46 // loop_exit
                  _
              $region47: #{simple_decoder_forward.5} parent=31 // pred_fallthru
                _
            $region32: #{simple_decoder_forward.5} parent=27 // pred_fallthru
              _
            // Predicated region
            $region33: #{simple_decoder_forward.5} parent=27 // pred_check
              _
            $region34: #{simple_decoder_forward.5} parent=27 // pred_check_branch
              %144 = sbr.rel (0) target = $region36
            $region35: #{simple_decoder_forward.5} parent=27 // pred_region
              %s146 = ssub.s32 16, 1
              loop: start=0, step=1, limit=1
              $region37: #{simple_decoder_forward.5} parent=35 // loop_pre_header
                _
              $region38: #{simple_decoder_forward.5} parent=35 // loop_header
                %s148 = sphi 0, %s152
                %p149 = scmp.ge.s32.totalorder %s148, 1
                %s153 = sphi %s138, %s138
                %s154 = sphi %s136, %s136
              $region39: #{simple_decoder_forward.5} parent=35 // loop_header_branch
                %151 = sbr.rel (%p149) target = $region43
              $region40: #{simple_decoder_forward.5} parent=35 // loop_body
                %v155 = vld [vmem:[%s153] sm:%s146]
                %156 = vst [vmem:[%s154] sm:%s146] %v155
                %v157 = vld [vmem:[%s153 + $0x10] sm:%s146]
                %158 = vst [vmem:[%s154 + $0x4] sm:%s146] %v157
                %v159 = vld [vmem:[%s153 + $0x20] sm:%s146]
                %160 = vst [vmem:[%s154 + $0x8] sm:%s146] %v159
                %v161 = vld [vmem:[%s153 + $0x30] sm:%s146]
                %162 = vst [vmem:[%s154 + $0xc] sm:%s146] %v161
                %v163 = vld [vmem:[%s153 + $0x40] sm:%s146]
                %164 = vst [vmem:[%s154 + $0x10] sm:%s146] %v163
                %v165 = vld [vmem:[%s153 + $0x50] sm:%s146]
                %166 = vst [vmem:[%s154 + $0x14] sm:%s146] %v165
                %v167 = vld [vmem:[%s153 + $0x60] sm:%s146]
                %168 = vst [vmem:[%s154 + $0x18] sm:%s146] %v167
                %v169 = vld [vmem:[%s153 + $0x70] sm:%s146]
                %170 = vst [vmem:[%s154 + $0x1c] sm:%s146] %v169
                %v171 = vld [vmem:[%s153 + $0x80] sm:%s146]
                %172 = vst [vmem:[%s154 + $0x20] sm:%s146] %v171
                %v173 = vld [vmem:[%s153 + $0x90] sm:%s146]
                %174 = vst [vmem:[%s154 + $0x24] sm:%s146] %v173
                %v175 = vld [vmem:[%s153 + $0xa0] sm:%s146]
                %176 = vst [vmem:[%s154 + $0x28] sm:%s146] %v175
                %v177 = vld [vmem:[%s153 + $0xb0] sm:%s146]
                %178 = vst [vmem:[%s154 + $0x2c] sm:%s146] %v177
                %v179 = vld [vmem:[%s153 + $0xc0] sm:%s146]
                %180 = vst [vmem:[%s154 + $0x30] sm:%s146] %v179
                %v181 = vld [vmem:[%s153 + $0xd0] sm:%s146]
                %182 = vst [vmem:[%s154 + $0x34] sm:%s146] %v181
                %v183 = vld [vmem:[%s153 + $0xe0] sm:%s146]
                %184 = vst [vmem:[%s154 + $0x38] sm:%s146] %v183
                %v185 = vld [vmem:[%s153 + $0xf0] sm:%s146]
                %186 = vst [vmem:[%s154 + $0x3c] sm:%s146] %v185
              $region41: #{simple_decoder_forward.5} parent=35 // loop_footer
                %s152 = sadd.s32 1, %s148
              $region42: #{simple_decoder_forward.5} parent=35 // loop_footer_branch
                %147 = sbr.rel target = $region38
              $region43: #{simple_decoder_forward.5} parent=35 // loop_exit
                _
            $region36: #{simple_decoder_forward.5} parent=27 // pred_fallthru
              _
          $region28: #{simple_decoder_forward.5} parent=23 // pred_fallthru
            _
          %239 = vnop
        $region24: #{simple_decoder_forward.5} parent=19 // pred_fallthru
          _
        // Predicated region
        $region62: #{simple_decoder_forward.5} parent=19 // pred_check
          %p240 = pneg %p76
        $region63: #{simple_decoder_forward.5} parent=19 // pred_check_branch
          %242 = sbr.rel (%p240) target = $region65
        $region64: #{simple_decoder_forward.5} parent=19 // pred_region
          %p243 = scmp.lt.s32.totalorder %s9, 3
          %s244 = scalar_select %p243, %s9, 3
          %s245 = scalar_lea.vmem %s2, %s244
        $region65: #{simple_decoder_forward.5} parent=19 // pred_fallthru
          _
      $region20: #{simple_decoder_forward.5} parent=5 // pred_fallthru
        _
      %p246 = scmp.le.s32.totalorder 1, %s9
      %p247 = scmp.lt.s32.totalorder %s9, 5
      %p248 = pnand %p246, %p247
      %p249 = pneg %p248
      // Predicated region
      $region66: #{simple_decoder_forward.5} parent=5 // pred_check
        _
      $region67: #{simple_decoder_forward.5} parent=5 // pred_check_branch
        %251 = sbr.rel (%p248) target = $region69
      $region68: #{simple_decoder_forward.5} parent=5 // pred_region
        %s252 = ssub.s32 %s9, 1
        %s253 = sand.u32 %s43, 1
        %s254 = sand.u32 %s43, 1
        %s255 = smul.addr %s254, 64
        %s256 = scalar_lea.vmem [#allocation2], %s255
        // Predicated region
        $region70: #{simple_decoder_forward.5} parent=68 // pred_check
          %p257 = pneg %p56
        $region71: #{simple_decoder_forward.5} parent=68 // pred_check_branch
          %259 = sbr.rel (%p257) target = $region73
        $region72: #{simple_decoder_forward.5} parent=68 // pred_region
          _
        $region73: #{simple_decoder_forward.5} parent=68 // pred_fallthru
          _
        %p260 = pneg %p30
        %p261 = pneg %p27
        %s262 = sand.u32 %s43, 1
        %s263 = sand.u32 %s43, 1
        %s264 = smul.addr %s263, 64
        %s265 = scalar_lea.vmem [#allocation2], %s264
        %p266 = pneg %p56
        %p267 = pneg %p53
        %p268 = scmp.lt.s32.totalorder %s14, 3
        %s269 = scalar_select %p268, %s14, 3
        %s270 = scalar_lea.vmem %s2, %s269
        %p271 = pneg %p82
        %p272 = pneg %p79
        %p273 = pneg %p108
        %p274 = pneg %p105
        %s275 = sand.u32 %s95, 1
        %s276 = sand.u32 %s95, 1
        %s277 = smul.addr %s276, 56
        %s278 = scalar_lea.vmem [#allocation3], %s277
        %p279 = scmp.lt.s32.totalorder %s14, 3
        %s280 = scalar_select %p279, %s14, 3
        %s281 = scalar_lea.vmem %s2, %s280
        %v283 = vld [vmem:[%s0] sm:$0xf]
        %v284 = vld [vmem:[%s0 + $0x4] sm:$0xf]
        %v285 = vld [vmem:[%s0 + $0x8] sm:$0xf]
        %v286 = vld [vmem:[%s0 + $0xc] sm:$0xf]
        %v287 = vld [vmem:[%s0 + $0x10] sm:$0xf]
        %v288 = vld [vmem:[%s0 + $0x14] sm:$0xf]
        %v289 = vld [vmem:[%s0 + $0x18] sm:$0xf]
        %v290 = vld [vmem:[%s256] sm:$0xf]
        %v291 = vld [vmem:[%s256 + $0x4] sm:$0xf]
        %v292 = vld [vmem:[%s256 + $0x8] sm:$0xf]
        %v293 = vld [vmem:[%s256 + $0xc] sm:$0xf]
        %v294 = vld [vmem:[%s256 + $0x10] sm:$0xf]
        %v295 = vld [vmem:[%s256 + $0x14] sm:$0xf]
        %v296 = vld [vmem:[%s256 + $0x18] sm:$0xf]
        %v297 = vld [vmem:[%s256 + $0x1c] sm:$0xf]
        %v298 = vld [vmem:[%s256 + $0x20] sm:$0xf]
        %v299 = vld [vmem:[%s256 + $0x24] sm:$0xf]
        %v300 = vld [vmem:[%s256 + $0x28] sm:$0xf]
        %v301 = vld [vmem:[%s256 + $0x2c] sm:$0xf]
        %v302 = vld [vmem:[%s256 + $0x30] sm:$0xf]
        %v303 = vld [vmem:[%s256 + $0x34] sm:$0xf]
        %v304 = vld [vmem:[%s256 + $0x38] sm:$0xf]
        %v305 = vld [vmem:[%s256 + $0x3c] sm:$0xf]
        %v306 = vld [vmem:[%s281] sm:$0x1]
        %v308 = vlaneseq
        %v309 = vshrl.u32 %v308, 7
        %v310 = vsub.s32 0, %v309
        %v311 = vrot.slane %v306, %v310
        %v320 = vunpack.c.l.b16 %v283
        %v321 = vunpack.c.l.b16 %v284
        %v322 = vunpack.c.l.b16 %v285
        %v323 = vunpack.c.l.b16 %v286
        %v324 = vunpack.c.l.b16 %v287
        %v325 = vunpack.c.l.b16 %v288
        %v326 = vunpack.c.l.b16 %v289
        %v327 = vpack.c.b16 %v321, %v320
        %v328 = vpack.c.b16 %v323, %v322
        %v329 = vpack.c.b16 %v325, %v324
        %v330 = vpack.c.b16 %v326, %v326
        %v351 = vunpack.c.l.b16 %v290
        %v352 = vunpack.c.l.b16 %v291
        %v353 = vunpack.c.l.b16 %v292
        %v354 = vunpack.c.l.b16 %v293
        %v355 = vunpack.c.l.b16 %v294
        %v356 = vunpack.c.l.b16 %v295
        %v357 = vunpack.c.l.b16 %v296
        %v358 = vunpack.c.l.b16 %v297
        %v359 = vunpack.c.l.b16 %v298
        %v360 = vunpack.c.l.b16 %v299
        %v361 = vunpack.c.l.b16 %v300
        %v362 = vunpack.c.l.b16 %v301
        %v363 = vunpack.c.l.b16 %v302
        %v364 = vunpack.c.l.b16 %v303
        %v365 = vunpack.c.l.b16 %v304
        %v366 = vunpack.c.l.b16 %v305
        %v367 = vpack.c.b16 %v352, %v351
        %v368 = vpack.c.b16 %v354, %v353
        %v369 = vpack.c.b16 %v356, %v355
        %v370 = vpack.c.b16 %v358, %v357
        %v371 = vpack.c.b16 %v360, %v359
        %v372 = vpack.c.b16 %v362, %v361
        %v373 = vpack.c.b16 %v364, %v363
        %v374 = vpack.c.b16 %v366, %v365
        %383 = vmatprep.subr.bf16.mxu0 0
        %384 = vmatpush1.bf16.msra.mxu0 %v374
        %385 = vmatprep.subr.bf16.mxu0 0
        %386 = vmatpush1.bf16.msra.mxu0 %v373
        %387 = vmatprep.subr.bf16.mxu0 0
        %388 = vmatpush1.bf16.msra.mxu0 %v372
        %389 = vmatprep.subr.bf16.mxu0 0
        %390 = vmatpush1.bf16.msra.mxu0 %v371
        %391 = vmatprep.subr.bf16.mxu0 0
        %392 = vmatpush1.bf16.msra.mxu0 %v370
        %393 = vmatprep.subr.bf16.mxu0 0
        %394 = vmatpush1.bf16.msra.mxu0 %v369
        %395 = vmatprep.subr.bf16.mxu0 0
        %396 = vmatpush1.bf16.msra.mxu0 %v368
        %397 = vmatprep.subr.bf16.mxu0 0
        %398 = vmatpush1.bf16.msra.mxu0 %v367
        %399 = vmatprep.subr.bf16.mxu0 0
        %400 = vmatpush2.bf16.msra.mxu0 0
        %401 = vmatprep.subr.bf16.mxu0 0
        %402 = vmatpush2.bf16.msra.mxu0 0
        %403 = vmatprep.subr.bf16.mxu0 0
        %404 = vmatpush2.bf16.msra.mxu0 0
        %405 = vmatprep.subr.bf16.mxu0 0
        %406 = vmatpush2.bf16.msra.mxu0 0
        %407 = vmatprep.subr.bf16.mxu0 0
        %408 = vmatpush2.bf16.msra.mxu0 0
        %409 = vmatprep.subr.bf16.mxu0 0
        %410 = vmatpush2.bf16.msra.mxu0 0
        %411 = vmatprep.subr.bf16.mxu0 0
        %412 = vmatpush2.bf16.msra.mxu0 0
        %413 = vmatprep.subr.bf16.mxu0 0
        %414 = vmatpush2.bf16.msra.mxu0 0
        %415 = vmatprep.mubr.bf16.mxu0 0
        %416 = vmatmul.mubr.bf16.gmra.mxu0 %v327
        %v417 = vpop.f32.mrf.mxu0
        %v418 = vadd.f32 %v311, %v417
        %v419 = vpop.f32.mrf.mxu0
        %v420 = vpop.f32.mrf.mxu0
        %v421 = vadd.f32 %v311, %v420
        %v422 = vpop.f32.mrf.mxu0
        %423 = vmatprep.mubr.bf16.mxu0 0
        %424 = vmatmul.mubr.bf16.gmra.mxu0 %v328
        %v425 = vpop.f32.mrf.mxu0
        %v426 = vadd.f32 %v311, %v425
        %v427 = vpop.f32.mrf.mxu0
        %v428 = vpop.f32.mrf.mxu0
        %v429 = vadd.f32 %v311, %v428
        %v430 = vpop.f32.mrf.mxu0
        %431 = vmatprep.mubr.bf16.mxu0 0
        %432 = vmatmul.mubr.bf16.gmra.mxu0 %v329
        %v433 = vpop.f32.mrf.mxu0
        %v434 = vadd.f32 %v311, %v433
        %v435 = vpop.f32.mrf.mxu0
        %v436 = vpop.f32.mrf.mxu0
        %v437 = vadd.f32 %v311, %v436
        %v438 = vpop.f32.mrf.mxu0
        %439 = vmatprep.mubr.bf16.mxu0 0
        %440 = vmatmul.mubr.bf16.gmra.mxu0 %v330
        %v441 = vpop.f32.mrf.mxu0
        %v442 = vadd.f32 %v311, %v441
        %v443 = vpop.f32.mrf.mxu0
        %v444 = vpop.f32.mrf.mxu0
        %v445 = vpop.f32.mrf.mxu0
        %446 = vdwg.mxu0
        %447 = vst [vmem:[%s278] sm:$0xff] %v418
        %448 = vst [vmem:[%s278 + $0x8] sm:$0xff] %v421
        %449 = vst [vmem:[%s278 + $0x10] sm:$0xff] %v426
        %450 = vst [vmem:[%s278 + $0x18] sm:$0xff] %v429
        %451 = vst [vmem:[%s278 + $0x20] sm:$0xff] %v434
        %452 = vst [vmem:[%s278 + $0x28] sm:$0xff] %v437
        %453 = vst [vmem:[%s278 + $0x30] sm:$0xff] %v442
        %s454 = sand.u32 %s95, 1
        %s455 = sand.u32 %s95, 1
        %s456 = smul.addr %s455, 56
        %s457 = scalar_lea.vmem [#allocation3], %s456
        // Predicated region
        $region74: #{simple_decoder_forward.5} parent=68 // pred_check
          %p458 = pneg %p105
        $region75: #{simple_decoder_forward.5} parent=68 // pred_check_branch
          %460 = sbr.rel (%p458) target = $region77
        $region76: #{simple_decoder_forward.5} parent=68 // pred_region
          %s461 = smul.addr %s14, 8
          %s462 = scalar_lea.vmem %s3, %s461
          // Predicated region
          $region78: #{simple_decoder_forward.5} parent=76 // pred_check
            _
          $region79: #{simple_decoder_forward.5} parent=76 // pred_check_branch
            %464 = sbr.rel (0) target = $region81
          $region80: #{simple_decoder_forward.5} parent=76 // pred_region
            // Predicated region
            $region82: #{simple_decoder_forward.5} parent=80 // pred_check
              _
            $region83: #{simple_decoder_forward.5} parent=80 // pred_check_branch
              %466 = sbr.rel (0) target = $region85
            $region84: #{simple_decoder_forward.5} parent=80 // pred_region
              // Predicated region
              $region97: #{simple_decoder_forward.5} parent=84 // pred_check
                _
              $region98: #{simple_decoder_forward.5} parent=84 // pred_check_branch
                %494 = sbr.rel (0) target = $region100
              $region99: #{simple_decoder_forward.5} parent=84 // pred_region
                loop: start=0, step=1, limit=1
                $region101: #{simple_decoder_forward.5} parent=99 // loop_pre_header
                  _
                $region102: #{simple_decoder_forward.5} parent=99 // loop_header
                  %s496 = sphi 0, %s500
                  %p497 = scmp.ge.s32.totalorder %s496, 1
                  %s501 = sphi %s457, %s457
                  %s502 = sphi %s462, %s462
                $region103: #{simple_decoder_forward.5} parent=99 // loop_header_branch
                  %499 = sbr.rel (%p497) target = $region107
                $region104: #{simple_decoder_forward.5} parent=99 // loop_body
                  %v503 = vld [vmem:[%s501] sm:$0xff]
                  %504 = vst [vmem:[%s502] sm:$0xff] %v503
                  %v505 = vld [vmem:[%s501 + $0x8] sm:$0xff]
                  %506 = vst [vmem:[%s502 + $0x20] sm:$0xff] %v505
                  %v507 = vld [vmem:[%s501 + $0x10] sm:$0xff]
                  %508 = vst [vmem:[%s502 + $0x40] sm:$0xff] %v507
                  %v509 = vld [vmem:[%s501 + $0x18] sm:$0xff]
                  %510 = vst [vmem:[%s502 + $0x60] sm:$0xff] %v509
                  %v511 = vld [vmem:[%s501 + $0x20] sm:$0xff]
                  %512 = vst [vmem:[%s502 + $0x80] sm:$0xff] %v511
                  %v513 = vld [vmem:[%s501 + $0x28] sm:$0xff]
                  %514 = vst [vmem:[%s502 + $0xa0] sm:$0xff] %v513
                  %v515 = vld [vmem:[%s501 + $0x30] sm:$0xff]
                  %516 = vst [vmem:[%s502 + $0xc0] sm:$0xff] %v515
                $region105: #{simple_decoder_forward.5} parent=99 // loop_footer
                  %s500 = sadd.s32 1, %s496
                $region106: #{simple_decoder_forward.5} parent=99 // loop_footer_branch
                  %495 = sbr.rel target = $region102
                $region107: #{simple_decoder_forward.5} parent=99 // loop_exit
                  _
              $region100: #{simple_decoder_forward.5} parent=84 // pred_fallthru
                _
              // Predicated region
              $region108: #{simple_decoder_forward.5} parent=84 // pred_check
                _
              $region109: #{simple_decoder_forward.5} parent=84 // pred_check_branch
                %518 = sbr.rel target = $region111
              $region110: #{simple_decoder_forward.5} parent=84 // pred_region
                _
              $region111: #{simple_decoder_forward.5} parent=84 // pred_fallthru
                _
            $region85: #{simple_decoder_forward.5} parent=80 // pred_fallthru
              _
            // Predicated region
            $region86: #{simple_decoder_forward.5} parent=80 // pred_check
              _
            $region87: #{simple_decoder_forward.5} parent=80 // pred_check_branch
              %468 = sbr.rel target = $region89
            $region88: #{simple_decoder_forward.5} parent=80 // pred_region
              %s470 = ssub.s32 256, 1
              loop: start=0, step=1, limit=1
              $region90: #{simple_decoder_forward.5} parent=88 // loop_pre_header
                _
              $region91: #{simple_decoder_forward.5} parent=88 // loop_header
                %s472 = sphi 0, %s476
                %p473 = scmp.ge.s32.totalorder %s472, 1
                %s477 = sphi %s457, %s457
                %s478 = sphi %s462, %s462
              $region92: #{simple_decoder_forward.5} parent=88 // loop_header_branch
                %475 = sbr.rel (%p473) target = $region96
              $region93: #{simple_decoder_forward.5} parent=88 // loop_body
                %v479 = vld [vmem:[%s477] sm:%s470]
                %480 = vst [vmem:[%s478] sm:%s470] %v479
                %v481 = vld [vmem:[%s477 + $0x8] sm:%s470]
                %482 = vst [vmem:[%s478 + $0x20] sm:%s470] %v481
                %v483 = vld [vmem:[%s477 + $0x10] sm:%s470]
                %484 = vst [vmem:[%s478 + $0x40] sm:%s470] %v483
                %v485 = vld [vmem:[%s477 + $0x18] sm:%s470]
                %486 = vst [vmem:[%s478 + $0x60] sm:%s470] %v485
                %v487 = vld [vmem:[%s477 + $0x20] sm:%s470]
                %488 = vst [vmem:[%s478 + $0x80] sm:%s470] %v487
                %v489 = vld [vmem:[%s477 + $0x28] sm:%s470]
                %490 = vst [vmem:[%s478 + $0xa0] sm:%s470] %v489
                %v491 = vld [vmem:[%s477 + $0x30] sm:%s470]
                %492 = vst [vmem:[%s478 + $0xc0] sm:%s470] %v491
              $region94: #{simple_decoder_forward.5} parent=88 // loop_footer
                %s476 = sadd.s32 1, %s472
              $region95: #{simple_decoder_forward.5} parent=88 // loop_footer_branch
                %471 = sbr.rel target = $region91
              $region96: #{simple_decoder_forward.5} parent=88 // loop_exit
                _
            $region89: #{simple_decoder_forward.5} parent=80 // pred_fallthru
              _
          $region81: #{simple_decoder_forward.5} parent=76 // pred_fallthru
            _
          %519 = vnop
        $region77: #{simple_decoder_forward.5} parent=68 // pred_fallthru
          _
      $region69: #{simple_decoder_forward.5} parent=5 // pred_fallthru
        _
      %p520 = scmp.le.s32.totalorder 2, %s9
      // Predicated region
      $region112: #{simple_decoder_forward.5} parent=5 // pred_check
        %p521 = pneg %p520
      $region113: #{simple_decoder_forward.5} parent=5 // pred_check_branch
        %523 = sbr.rel (%p521) target = $region115
      $region114: #{simple_decoder_forward.5} parent=5 // pred_region
        %s524 = ssub.s32 %s9, 2
        // Predicated region
        $region116: #{simple_decoder_forward.5} parent=114 // pred_check
          %p525 = pneg %p111
        $region117: #{simple_decoder_forward.5} parent=114 // pred_check_branch
          %527 = sbr.rel (%p525) target = $region119
        $region118: #{simple_decoder_forward.5} parent=114 // pred_region
          %s528 = sand.u32 %s96, 1
          %s529 = sand.u32 %s96, 1
          %s530 = smul.addr %s529, 56
          %s531 = scalar_lea.vmem [#allocation3], %s530
        $region119: #{simple_decoder_forward.5} parent=114 // pred_fallthru
          _
      $region115: #{simple_decoder_forward.5} parent=5 // pred_fallthru
        _
    $region6: #{simple_decoder_forward.5} parent=1 // loop_footer
      %s13 = sadd.s32 1, %s9
    $region7: #{simple_decoder_forward.5} parent=1 // loop_footer_branch
      %8 = sbr.rel target = $region3
    $region8: #{simple_decoder_forward.5} parent=1 // loop_exit
      _

// kernel: simple_decoder_forward.4
$region0: #{simple_decoder_forward.4}
  #allocation0 [shape = 'u32[]', space=smem, size = 0x4, offset = 0x4, fixed_abs, tag = 'smem constant byte address 0x4 - core index']
  #allocation1 [shape = 'u32[144,128]{1,0:T(1,128)}', space=vmem, size = 0x12000, scoped, tag = 'internal scratch']
  #allocation2 [shape = 'f32[8,256]{1,0:T(8,128)}', space=vmem, size = 0x2000, scoped, tag = 'scratch operand']
  %s0 = inlined_call_operand.vmem [shape: bf16[8,128], index: 0, kind: input, shape index: {}]
  %s1 = inlined_call_operand.vmem [shape: bf16[128,256], index: 1, kind: input, shape index: {}]
  %s2 = inlined_call_operand.vmem [shape: f32[1,256], index: 2, kind: input, shape index: {}]
  %s3 = inlined_call_operand.vmem [shape: f32[8,256], index: 3, kind: output, shape index: {}]
  %s4 = sld [smem:[#allocation0]]
  $region30: #{simple_decoder_forward.4} parent=0
    _
  %s6 = ssub.s32 1, %s4
  %s7 = scalar_select 0, %s6, %s4
  // Predicated region
  $region2: #{simple_decoder_forward.4} parent=0 // pred_check
    _
  $region3: #{simple_decoder_forward.4} parent=0 // pred_check_branch
    %9 = sbr.rel (0) target = $region5
  $region4: #{simple_decoder_forward.4} parent=0 // pred_region
    _
  $region5: #{simple_decoder_forward.4} parent=0 // pred_fallthru
    _
  // Predicated region
  $region6: #{simple_decoder_forward.4} parent=0 // pred_check
    _
  $region7: #{simple_decoder_forward.4} parent=0 // pred_check_branch
    %11 = sbr.rel (0) target = $region9
  $region8: #{simple_decoder_forward.4} parent=0 // pred_region
    _
  $region9: #{simple_decoder_forward.4} parent=0 // pred_fallthru
    _
  // Predicated region
  $region10: #{simple_decoder_forward.4} parent=0 // pred_check
    _
  $region11: #{simple_decoder_forward.4} parent=0 // pred_check_branch
    %13 = sbr.rel (0) target = $region13
  $region12: #{simple_decoder_forward.4} parent=0 // pred_region
    _
  $region13: #{simple_decoder_forward.4} parent=0 // pred_fallthru
    _
  %p15 = scmp.eq.s32.totalorder 0, 0
  // Predicated region
  $region14: #{simple_decoder_forward.4} parent=0 // pred_check
    %p16 = pneg %p15
  $region15: #{simple_decoder_forward.4} parent=0 // pred_check_branch
    %18 = sbr.rel (%p16) target = $region17
  $region16: #{simple_decoder_forward.4} parent=0 // pred_region
    %19 = vst [vmem:[#allocation2] sm:$0xff] 0.0
    %20 = vst [vmem:[#allocation2 + $0x8] sm:$0xff] 0.0
  $region17: #{simple_decoder_forward.4} parent=0 // pred_fallthru
    _
  %v21 = vld [vmem:[#allocation2] sm:$0xff]
  %v22 = vld [vmem:[#allocation2 + $0x8] sm:$0xff]
  %v23 = vld [vmem:[%s0] sm:$0xf]
  %v24 = vld [vmem:[%s1] sm:$0xff]
  %v25 = vld [vmem:[%s1 + $0x8] sm:$0xff]
  %v26 = vld [vmem:[%s1 + $0x10] sm:$0xff]
  %v27 = vld [vmem:[%s1 + $0x18] sm:$0xff]
  %v28 = vld [vmem:[%s1 + $0x20] sm:$0xff]
  %v29 = vld [vmem:[%s1 + $0x28] sm:$0xff]
  %v30 = vld [vmem:[%s1 + $0x30] sm:$0xff]
  %v31 = vld [vmem:[%s1 + $0x38] sm:$0xff]
  %v32 = vld [vmem:[%s1 + $0x40] sm:$0xff]
  %v33 = vld [vmem:[%s1 + $0x48] sm:$0xff]
  %v34 = vld [vmem:[%s1 + $0x50] sm:$0xff]
  %v35 = vld [vmem:[%s1 + $0x58] sm:$0xff]
  %v36 = vld [vmem:[%s1 + $0x60] sm:$0xff]
  %v37 = vld [vmem:[%s1 + $0x68] sm:$0xff]
  %v38 = vld [vmem:[%s1 + $0x70] sm:$0xff]
  %v39 = vld [vmem:[%s1 + $0x78] sm:$0xff]
  %v56 = vunpack.c.l.b16 %v24
  %v57 = vunpack.c.h.b16 %v24
  %v58 = vunpack.c.l.b16 %v25
  %v59 = vunpack.c.h.b16 %v25
  %v60 = vunpack.c.l.b16 %v26
  %v61 = vunpack.c.h.b16 %v26
  %v62 = vunpack.c.l.b16 %v27
  %v63 = vunpack.c.h.b16 %v27
  %v64 = vunpack.c.l.b16 %v28
  %v65 = vunpack.c.h.b16 %v28
  %v66 = vunpack.c.l.b16 %v29
  %v67 = vunpack.c.h.b16 %v29
  %v68 = vunpack.c.l.b16 %v30
  %v69 = vunpack.c.h.b16 %v30
  %v70 = vunpack.c.l.b16 %v31
  %v71 = vunpack.c.h.b16 %v31
  %v72 = vunpack.c.l.b16 %v32
  %v73 = vunpack.c.h.b16 %v32
  %v74 = vunpack.c.l.b16 %v33
  %v75 = vunpack.c.h.b16 %v33
  %v76 = vunpack.c.l.b16 %v34
  %v77 = vunpack.c.h.b16 %v34
  %v78 = vunpack.c.l.b16 %v35
  %v79 = vunpack.c.h.b16 %v35
  %v80 = vunpack.c.l.b16 %v36
  %v81 = vunpack.c.h.b16 %v36
  %v82 = vunpack.c.l.b16 %v37
  %v83 = vunpack.c.h.b16 %v37
  %v84 = vunpack.c.l.b16 %v38
  %v85 = vunpack.c.h.b16 %v38
  %v86 = vunpack.c.l.b16 %v39
  %v87 = vunpack.c.h.b16 %v39
  %v88 = vpack.c.b16 %v58, %v56
  %v89 = vpack.c.b16 %v59, %v57
  %v90 = vpack.c.b16 %v62, %v60
  %v91 = vpack.c.b16 %v63, %v61
  %v92 = vpack.c.b16 %v66, %v64
  %v93 = vpack.c.b16 %v67, %v65
  %v94 = vpack.c.b16 %v70, %v68
  %v95 = vpack.c.b16 %v71, %v69
  %v96 = vpack.c.b16 %v74, %v72
  %v97 = vpack.c.b16 %v75, %v73
  %v98 = vpack.c.b16 %v78, %v76
  %v99 = vpack.c.b16 %v79, %v77
  %v100 = vpack.c.b16 %v82, %v80
  %v101 = vpack.c.b16 %v83, %v81
  %v102 = vpack.c.b16 %v86, %v84
  %v103 = vpack.c.b16 %v87, %v85
  %120 = vmatprep.subr.bf16.mxu0 %v103
  %121 = vmatpush1.bf16.msra.mxu0 %v102
  %122 = vmatprep.subr.bf16.mxu0 %v101
  %123 = vmatpush1.bf16.msra.mxu0 %v100
  %124 = vmatprep.subr.bf16.mxu0 %v99
  %125 = vmatpush1.bf16.msra.mxu0 %v98
  %126 = vmatprep.subr.bf16.mxu0 %v97
  %127 = vmatpush1.bf16.msra.mxu0 %v96
  %128 = vmatprep.subr.bf16.mxu0 %v95
  %129 = vmatpush1.bf16.msra.mxu0 %v94
  %130 = vmatprep.subr.bf16.mxu0 %v93
  %131 = vmatpush1.bf16.msra.mxu0 %v92
  %132 = vmatprep.subr.bf16.mxu0 %v91
  %133 = vmatpush1.bf16.msra.mxu0 %v90
  %134 = vmatprep.subr.bf16.mxu0 %v89
  %135 = vmatpush1.bf16.msra.mxu0 %v88
  %136 = vmatprep.subr.bf16.mxu0 0
  %137 = vmatpush2.bf16.msra.mxu0 0
  %138 = vmatprep.subr.bf16.mxu0 0
  %139 = vmatpush2.bf16.msra.mxu0 0
  %140 = vmatprep.subr.bf16.mxu0 0
  %141 = vmatpush2.bf16.msra.mxu0 0
  %142 = vmatprep.subr.bf16.mxu0 0
  %143 = vmatpush2.bf16.msra.mxu0 0
  %144 = vmatprep.subr.bf16.mxu0 0
  %145 = vmatpush2.bf16.msra.mxu0 0
  %146 = vmatprep.subr.bf16.mxu0 0
  %147 = vmatpush2.bf16.msra.mxu0 0
  %148 = vmatprep.subr.bf16.mxu0 0
  %149 = vmatpush2.bf16.msra.mxu0 0
  %150 = vmatprep.subr.bf16.mxu0 0
  %151 = vmatpush2.bf16.msra.mxu0 0
  %152 = vmatprep.mubr.bf16.mxu0 0
  %153 = vmatmul.mubr.bf16.gmra.mxu0 %v23
  %v154 = vpop.f32.mrf.mxu0
  %v155 = vadd.f32 0.0, %v154
  %v156 = vpop.f32.mrf.mxu0
  %v157 = vadd.f32 0.0, %v156
  %v158 = vpop.f32.mrf.mxu0
  %v159 = vpop.f32.mrf.mxu0
  %160 = vdwg.mxu0
  %v161 = vadd.f32 %v21, %v155
  %v162 = vadd.f32 %v22, %v157
  %163 = vst [vmem:[#allocation2] sm:$0xff] %v161
  %164 = vst [vmem:[#allocation2 + $0x8] sm:$0xff] %v162
  // Predicated region
  $region18: #{simple_decoder_forward.4} parent=0 // pred_check
    %p165 = pneg %p15
  $region19: #{simple_decoder_forward.4} parent=0 // pred_check_branch
    %167 = sbr.rel (%p165) target = $region21
  $region20: #{simple_decoder_forward.4} parent=0 // pred_region
    %v168 = vld [vmem:[#allocation2] sm:$0xff]
    %v169 = vld [vmem:[#allocation2 + $0x8] sm:$0xff]
    %v170 = vld [vmem:[%s2] sm:$0x3]
    %v172 = vlaneseq
    %v173 = vshrl.u32 %v172, 7
    %v174 = vsub.s32 0, %v173
    %v175 = vrot.slane %v170, %v174
    %v176 = vlaneseq
    %v177 = vshrl.u32 %v176, 7
    %v178 = vsub.s32 1, %v177
    %v179 = vrot.slane %v170, %v178
    %v182 = vadd.f32 %v168, %v175
    %v183 = vadd.f32 %v169, %v179
    %184 = vst [vmem:[%s3] sm:$0xff] %v182
    %185 = vst [vmem:[%s3 + $0x8] sm:$0xff] %v183
  $region21: #{simple_decoder_forward.4} parent=0 // pred_fallthru
    _
  // Predicated region
  $region22: #{simple_decoder_forward.4} parent=0 // pred_check
    _
  $region23: #{simple_decoder_forward.4} parent=0 // pred_check_branch
    %187 = sbr.rel (0) target = $region25
  $region24: #{simple_decoder_forward.4} parent=0 // pred_region
    _
  $region25: #{simple_decoder_forward.4} parent=0 // pred_fallthru
    _
  // Predicated region
  $region26: #{simple_decoder_forward.4} parent=0 // pred_check
    _
  $region27: #{simple_decoder_forward.4} parent=0 // pred_check_branch
    %189 = sbr.rel (0) target = $region29
  $region28: #{simple_decoder_forward.4} parent=0 // pred_region
    _
  $region29: #{simple_decoder_forward.4} parent=0 // pred_fallthru
    _

// kernel: simple_decoder_forward.7
$region0: #{simple_decoder_forward.7}
  #allocation0 [shape = 'u32[]', space=smem, size = 0x4, offset = 0x4, fixed_abs, tag = 'smem constant byte address 0x4 - core index']
  #allocation1 [shape = 'u32[144,128]{1,0:T(1,128)}', space=vmem, size = 0x12000, scoped, tag = 'internal scratch']
  %s0 = inlined_call_operand.vmem [shape: bf16[56,128], index: 0, kind: input, shape index: {}]
  %s1 = inlined_call_operand.vmem [shape: bf16[128,128], index: 1, kind: input, shape index: {}]
  %s2 = inlined_call_operand.vmem [shape: f32[1,128], index: 2, kind: input, shape index: {}]
  %s3 = inlined_call_operand.vmem [shape: f32[56,128], index: 3, kind: output, shape index: {}]
  %s4 = sld [smem:[#allocation0]]
  $region22: #{simple_decoder_forward.7} parent=0
    _
  %s6 = ssub.s32 1, %s4
  %s7 = scalar_select 0, %s6, %s4
  // Predicated region
  $region2: #{simple_decoder_forward.7} parent=0 // pred_check
    _
  $region3: #{simple_decoder_forward.7} parent=0 // pred_check_branch
    %9 = sbr.rel (0) target = $region5
  $region4: #{simple_decoder_forward.7} parent=0 // pred_region
    _
  $region5: #{simple_decoder_forward.7} parent=0 // pred_fallthru
    _
  // Predicated region
  $region6: #{simple_decoder_forward.7} parent=0 // pred_check
    _
  $region7: #{simple_decoder_forward.7} parent=0 // pred_check_branch
    %11 = sbr.rel (0) target = $region9
  $region8: #{simple_decoder_forward.7} parent=0 // pred_region
    _
  $region9: #{simple_decoder_forward.7} parent=0 // pred_fallthru
    _
  // Predicated region
  $region10: #{simple_decoder_forward.7} parent=0 // pred_check
    _
  $region11: #{simple_decoder_forward.7} parent=0 // pred_check_branch
    %13 = sbr.rel (0) target = $region13
  $region12: #{simple_decoder_forward.7} parent=0 // pred_region
    _
  $region13: #{simple_decoder_forward.7} parent=0 // pred_fallthru
    _
  %v15 = vld [vmem:[%s0] sm:$0xf]
  %v16 = vld [vmem:[%s0 + $0x4] sm:$0xf]
  %v17 = vld [vmem:[%s0 + $0x8] sm:$0xf]
  %v18 = vld [vmem:[%s0 + $0xc] sm:$0xf]
  %v19 = vld [vmem:[%s0 + $0x10] sm:$0xf]
  %v20 = vld [vmem:[%s0 + $0x14] sm:$0xf]
  %v21 = vld [vmem:[%s0 + $0x18] sm:$0xf]
  %v22 = vld [vmem:[%s1] sm:$0xf]
  %v23 = vld [vmem:[%s1 + $0x4] sm:$0xf]
  %v24 = vld [vmem:[%s1 + $0x8] sm:$0xf]
  %v25 = vld [vmem:[%s1 + $0xc] sm:$0xf]
  %v26 = vld [vmem:[%s1 + $0x10] sm:$0xf]
  %v27 = vld [vmem:[%s1 + $0x14] sm:$0xf]
  %v28 = vld [vmem:[%s1 + $0x18] sm:$0xf]
  %v29 = vld [vmem:[%s1 + $0x1c] sm:$0xf]
  %v30 = vld [vmem:[%s1 + $0x20] sm:$0xf]
  %v31 = vld [vmem:[%s1 + $0x24] sm:$0xf]
  %v32 = vld [vmem:[%s1 + $0x28] sm:$0xf]
  %v33 = vld [vmem:[%s1 + $0x2c] sm:$0xf]
  %v34 = vld [vmem:[%s1 + $0x30] sm:$0xf]
  %v35 = vld [vmem:[%s1 + $0x34] sm:$0xf]
  %v36 = vld [vmem:[%s1 + $0x38] sm:$0xf]
  %v37 = vld [vmem:[%s1 + $0x3c] sm:$0xf]
  %v38 = vld [vmem:[%s2] sm:$0x1]
  %v40 = vlaneseq
  %v41 = vshrl.u32 %v40, 7
  %v42 = vsub.s32 0, %v41
  %v43 = vrot.slane %v38, %v42
  %v52 = vunpack.c.l.b16 %v15
  %v53 = vunpack.c.l.b16 %v16
  %v54 = vunpack.c.l.b16 %v17
  %v55 = vunpack.c.l.b16 %v18
  %v56 = vunpack.c.l.b16 %v19
  %v57 = vunpack.c.l.b16 %v20
  %v58 = vunpack.c.l.b16 %v21
  %v59 = vpack.c.b16 %v53, %v52
  %v60 = vpack.c.b16 %v55, %v54
  %v61 = vpack.c.b16 %v57, %v56
  %v62 = vpack.c.b16 %v58, %v58
  %v83 = vunpack.c.l.b16 %v22
  %v84 = vunpack.c.l.b16 %v23
  %v85 = vunpack.c.l.b16 %v24
  %v86 = vunpack.c.l.b16 %v25
  %v87 = vunpack.c.l.b16 %v26
  %v88 = vunpack.c.l.b16 %v27
  %v89 = vunpack.c.l.b16 %v28
  %v90 = vunpack.c.l.b16 %v29
  %v91 = vunpack.c.l.b16 %v30
  %v92 = vunpack.c.l.b16 %v31
  %v93 = vunpack.c.l.b16 %v32
  %v94 = vunpack.c.l.b16 %v33
  %v95 = vunpack.c.l.b16 %v34
  %v96 = vunpack.c.l.b16 %v35
  %v97 = vunpack.c.l.b16 %v36
  %v98 = vunpack.c.l.b16 %v37
  %v99 = vpack.c.b16 %v84, %v83
  %v100 = vpack.c.b16 %v86, %v85
  %v101 = vpack.c.b16 %v88, %v87
  %v102 = vpack.c.b16 %v90, %v89
  %v103 = vpack.c.b16 %v92, %v91
  %v104 = vpack.c.b16 %v94, %v93
  %v105 = vpack.c.b16 %v96, %v95
  %v106 = vpack.c.b16 %v98, %v97
  %115 = vmatprep.subr.bf16.mxu0 0
  %116 = vmatpush1.bf16.msra.mxu0 %v106
  %117 = vmatprep.subr.bf16.mxu0 0
  %118 = vmatpush1.bf16.msra.mxu0 %v105
  %119 = vmatprep.subr.bf16.mxu0 0
  %120 = vmatpush1.bf16.msra.mxu0 %v104
  %121 = vmatprep.subr.bf16.mxu0 0
  %122 = vmatpush1.bf16.msra.mxu0 %v103
  %123 = vmatprep.subr.bf16.mxu0 0
  %124 = vmatpush1.bf16.msra.mxu0 %v102
  %125 = vmatprep.subr.bf16.mxu0 0
  %126 = vmatpush1.bf16.msra.mxu0 %v101
  %127 = vmatprep.subr.bf16.mxu0 0
  %128 = vmatpush1.bf16.msra.mxu0 %v100
  %129 = vmatprep.subr.bf16.mxu0 0
  %130 = vmatpush1.bf16.msra.mxu0 %v99
  %131 = vmatprep.subr.bf16.mxu0 0
  %132 = vmatpush2.bf16.msra.mxu0 0
  %133 = vmatprep.subr.bf16.mxu0 0
  %134 = vmatpush2.bf16.msra.mxu0 0
  %135 = vmatprep.subr.bf16.mxu0 0
  %136 = vmatpush2.bf16.msra.mxu0 0
  %137 = vmatprep.subr.bf16.mxu0 0
  %138 = vmatpush2.bf16.msra.mxu0 0
  %139 = vmatprep.subr.bf16.mxu0 0
  %140 = vmatpush2.bf16.msra.mxu0 0
  %141 = vmatprep.subr.bf16.mxu0 0
  %142 = vmatpush2.bf16.msra.mxu0 0
  %143 = vmatprep.subr.bf16.mxu0 0
  %144 = vmatpush2.bf16.msra.mxu0 0
  %145 = vmatprep.subr.bf16.mxu0 0
  %146 = vmatpush2.bf16.msra.mxu0 0
  %147 = vmatprep.mubr.bf16.mxu0 0
  %148 = vmatmul.mubr.bf16.gmra.mxu0 %v59
  %v149 = vpop.f32.mrf.mxu0
  %v150 = vadd.f32 %v43, %v149
  %v151 = vpop.f32.mrf.mxu0
  %v152 = vpop.f32.mrf.mxu0
  %v153 = vadd.f32 %v43, %v152
  %v154 = vpop.f32.mrf.mxu0
  %155 = vmatprep.mubr.bf16.mxu0 0
  %156 = vmatmul.mubr.bf16.gmra.mxu0 %v60
  %v157 = vpop.f32.mrf.mxu0
  %v158 = vadd.f32 %v43, %v157
  %v159 = vpop.f32.mrf.mxu0
  %v160 = vpop.f32.mrf.mxu0
  %v161 = vadd.f32 %v43, %v160
  %v162 = vpop.f32.mrf.mxu0
  %163 = vmatprep.mubr.bf16.mxu0 0
  %164 = vmatmul.mubr.bf16.gmra.mxu0 %v61
  %v165 = vpop.f32.mrf.mxu0
  %v166 = vadd.f32 %v43, %v165
  %v167 = vpop.f32.mrf.mxu0
  %v168 = vpop.f32.mrf.mxu0
  %v169 = vadd.f32 %v43, %v168
  %v170 = vpop.f32.mrf.mxu0
  %171 = vmatprep.mubr.bf16.mxu0 0
  %172 = vmatmul.mubr.bf16.gmra.mxu0 %v62
  %v173 = vpop.f32.mrf.mxu0
  %v174 = vadd.f32 %v43, %v173
  %v175 = vpop.f32.mrf.mxu0
  %v176 = vpop.f32.mrf.mxu0
  %v177 = vpop.f32.mrf.mxu0
  %178 = vdwg.mxu0
  %179 = vst [vmem:[%s3] sm:$0xff] %v150
  %180 = vst [vmem:[%s3 + $0x8] sm:$0xff] %v153
  %181 = vst [vmem:[%s3 + $0x10] sm:$0xff] %v158
  %182 = vst [vmem:[%s3 + $0x18] sm:$0xff] %v161
  %183 = vst [vmem:[%s3 + $0x20] sm:$0xff] %v166
  %184 = vst [vmem:[%s3 + $0x28] sm:$0xff] %v169
  %185 = vst [vmem:[%s3 + $0x30] sm:$0xff] %v174
  // Predicated region
  $region14: #{simple_decoder_forward.7} parent=0 // pred_check
    _
  $region15: #{simple_decoder_forward.7} parent=0 // pred_check_branch
    %187 = sbr.rel (0) target = $region17
  $region16: #{simple_decoder_forward.7} parent=0 // pred_region
    _
  $region17: #{simple_decoder_forward.7} parent=0 // pred_fallthru
    _
  // Predicated region
  $region18: #{simple_decoder_forward.7} parent=0 // pred_check
    _
  $region19: #{simple_decoder_forward.7} parent=0 // pred_check_branch
    %189 = sbr.rel (0) target = $region21
  $region20: #{simple_decoder_forward.7} parent=0 // pred_region
    _
  $region21: #{simple_decoder_forward.7} parent=0 // pred_fallthru
    _

// kernel: simple_decoder_forward.6
$region0: #{simple_decoder_forward.6}
  #allocation0 [shape = 'u32[]', space=smem, size = 0x4, offset = 0x4, fixed_abs, tag = 'smem constant byte address 0x4 - core index']
  #allocation1 [shape = 'u32[144,128]{1,0:T(1,128)}', space=vmem, size = 0x12000, scoped, tag = 'internal scratch']
  %s0 = inlined_call_operand.vmem [shape: f32[8,256], index: 0, kind: input, shape index: {}]
  %s1 = inlined_call_operand.vmem [shape: f32[7,8,512], index: 1, kind: input, shape index: {}]
  %s2 = inlined_call_operand.vmem [shape: bf16[128,512], index: 2, kind: input, shape index: {}]
  %s3 = inlined_call_operand.vmem [shape: bf16[7,8,128], index: 3, kind: output, shape index: {}]
  %s4 = sld [smem:[#allocation0]]
  $region22: #{simple_decoder_forward.6} parent=0
    _
  %s6 = ssub.s32 1, %s4
  %s7 = scalar_select 0, %s6, %s4
  // Predicated region
  $region2: #{simple_decoder_forward.6} parent=0 // pred_check
    _
  $region3: #{simple_decoder_forward.6} parent=0 // pred_check_branch
    %9 = sbr.rel (0) target = $region5
  $region4: #{simple_decoder_forward.6} parent=0 // pred_region
    _
  $region5: #{simple_decoder_forward.6} parent=0 // pred_fallthru
    _
  // Predicated region
  $region6: #{simple_decoder_forward.6} parent=0 // pred_check
    _
  $region7: #{simple_decoder_forward.6} parent=0 // pred_check_branch
    %11 = sbr.rel (0) target = $region9
  $region8: #{simple_decoder_forward.6} parent=0 // pred_region
    _
  $region9: #{simple_decoder_forward.6} parent=0 // pred_fallthru
    _
  // Predicated region
  $region10: #{simple_decoder_forward.6} parent=0 // pred_check
    _
  $region11: #{simple_decoder_forward.6} parent=0 // pred_check_branch
    %13 = sbr.rel (0) target = $region13
  $region12: #{simple_decoder_forward.6} parent=0 // pred_region
    _
  $region13: #{simple_decoder_forward.6} parent=0 // pred_fallthru
    _
  %v15 = vld [vmem:[%s0] sm:$0xff]
  %v16 = vld [vmem:[%s0 + $0x8] sm:$0xff]
  %v17 = vld [vmem:[%s2] sm:$0xff]
  %v18 = vld [vmem:[%s2 + $0x8] sm:$0xff]
  %v19 = vld [vmem:[%s2 + $0x10] sm:$0xff]
  %v20 = vld [vmem:[%s2 + $0x18] sm:$0xff]
  %v21 = vld [vmem:[%s2 + $0x20] sm:$0xff]
  %v22 = vld [vmem:[%s2 + $0x28] sm:$0xff]
  %v23 = vld [vmem:[%s2 + $0x30] sm:$0xff]
  %v24 = vld [vmem:[%s2 + $0x38] sm:$0xff]
  %v25 = vld [vmem:[%s2 + $0x40] sm:$0xff]
  %v26 = vld [vmem:[%s2 + $0x48] sm:$0xff]
  %v27 = vld [vmem:[%s2 + $0x50] sm:$0xff]
  %v28 = vld [vmem:[%s2 + $0x58] sm:$0xff]
  %v29 = vld [vmem:[%s2 + $0x60] sm:$0xff]
  %v30 = vld [vmem:[%s2 + $0x68] sm:$0xff]
  %v31 = vld [vmem:[%s2 + $0x70] sm:$0xff]
  %v32 = vld [vmem:[%s2 + $0x78] sm:$0xff]
  %v33 = vld [vmem:[%s2 + $0x80] sm:$0xff]
  %v34 = vld [vmem:[%s2 + $0x88] sm:$0xff]
  %v35 = vld [vmem:[%s2 + $0x90] sm:$0xff]
  %v36 = vld [vmem:[%s2 + $0x98] sm:$0xff]
  %v37 = vld [vmem:[%s2 + $0xa0] sm:$0xff]
  %v38 = vld [vmem:[%s2 + $0xa8] sm:$0xff]
  %v39 = vld [vmem:[%s2 + $0xb0] sm:$0xff]
  %v40 = vld [vmem:[%s2 + $0xb8] sm:$0xff]
  %v41 = vld [vmem:[%s2 + $0xc0] sm:$0xff]
  %v42 = vld [vmem:[%s2 + $0xc8] sm:$0xff]
  %v43 = vld [vmem:[%s2 + $0xd0] sm:$0xff]
  %v44 = vld [vmem:[%s2 + $0xd8] sm:$0xff]
  %v45 = vld [vmem:[%s2 + $0xe0] sm:$0xff]
  %v46 = vld [vmem:[%s2 + $0xe8] sm:$0xff]
  %v47 = vld [vmem:[%s2 + $0xf0] sm:$0xff]
  %v48 = vld [vmem:[%s2 + $0xf8] sm:$0xff]
  %v49 = vld [vmem:[%s1] sm:$0xff]
  %v50 = vld [vmem:[%s1 + $0x8] sm:$0xff]
  %v51 = vld [vmem:[%s1 + $0x10] sm:$0xff]
  %v52 = vld [vmem:[%s1 + $0x18] sm:$0xff]
  %v53 = vpack.c.bf16 %v15, %v15
  %v86 = vunpack.c.l.b16 %v17
  %v87 = vunpack.c.h.b16 %v17
  %v88 = vunpack.c.l.b16 %v18
  %v89 = vunpack.c.h.b16 %v18
  %v90 = vunpack.c.l.b16 %v19
  %v91 = vunpack.c.h.b16 %v19
  %v92 = vunpack.c.l.b16 %v20
  %v93 = vunpack.c.h.b16 %v20
  %v94 = vunpack.c.l.b16 %v21
  %v95 = vunpack.c.h.b16 %v21
  %v96 = vunpack.c.l.b16 %v22
  %v97 = vunpack.c.h.b16 %v22
  %v98 = vunpack.c.l.b16 %v23
  %v99 = vunpack.c.h.b16 %v23
  %v100 = vunpack.c.l.b16 %v24
  %v101 = vunpack.c.h.b16 %v24
  %v102 = vunpack.c.l.b16 %v25
  %v103 = vunpack.c.h.b16 %v25
  %v104 = vunpack.c.l.b16 %v26
  %v105 = vunpack.c.h.b16 %v26
  %v106 = vunpack.c.l.b16 %v27
  %v107 = vunpack.c.h.b16 %v27
  %v108 = vunpack.c.l.b16 %v28
  %v109 = vunpack.c.h.b16 %v28
  %v110 = vunpack.c.l.b16 %v29
  %v111 = vunpack.c.h.b16 %v29
  %v112 = vunpack.c.l.b16 %v30
  %v113 = vunpack.c.h.b16 %v30
  %v114 = vunpack.c.l.b16 %v31
  %v115 = vunpack.c.h.b16 %v31
  %v116 = vunpack.c.l.b16 %v32
  %v117 = vunpack.c.h.b16 %v32
  %v118 = vunpack.c.l.b16 %v33
  %v119 = vunpack.c.h.b16 %v33
  %v120 = vunpack.c.l.b16 %v34
  %v121 = vunpack.c.h.b16 %v34
  %v122 = vunpack.c.l.b16 %v35
  %v123 = vunpack.c.h.b16 %v35
  %v124 = vunpack.c.l.b16 %v36
  %v125 = vunpack.c.h.b16 %v36
  %v126 = vunpack.c.l.b16 %v37
  %v127 = vunpack.c.h.b16 %v37
  %v128 = vunpack.c.l.b16 %v38
  %v129 = vunpack.c.h.b16 %v38
  %v130 = vunpack.c.l.b16 %v39
  %v131 = vunpack.c.h.b16 %v39
  %v132 = vunpack.c.l.b16 %v40
  %v133 = vunpack.c.h.b16 %v40
  %v134 = vunpack.c.l.b16 %v41
  %v135 = vunpack.c.h.b16 %v41
  %v136 = vunpack.c.l.b16 %v42
  %v137 = vunpack.c.h.b16 %v42
  %v138 = vunpack.c.l.b16 %v43
  %v139 = vunpack.c.h.b16 %v43
  %v140 = vunpack.c.l.b16 %v44
  %v141 = vunpack.c.h.b16 %v44
  %v142 = vunpack.c.l.b16 %v45
  %v143 = vunpack.c.h.b16 %v45
  %v144 = vunpack.c.l.b16 %v46
  %v145 = vunpack.c.h.b16 %v46
  %v146 = vunpack.c.l.b16 %v47
  %v147 = vunpack.c.h.b16 %v47
  %v148 = vunpack.c.l.b16 %v48
  %v149 = vunpack.c.h.b16 %v48
  %v150 = vpack.c.b16 %v90, %v86
  %v151 = vpack.c.b16 %v91, %v87
  %v152 = vpack.c.b16 %v92, %v88
  %v153 = vpack.c.b16 %v93, %v89
  %v154 = vpack.c.b16 %v98, %v94
  %v155 = vpack.c.b16 %v99, %v95
  %v156 = vpack.c.b16 %v100, %v96
  %v157 = vpack.c.b16 %v101, %v97
  %v158 = vpack.c.b16 %v106, %v102
  %v159 = vpack.c.b16 %v107, %v103
  %v160 = vpack.c.b16 %v108, %v104
  %v161 = vpack.c.b16 %v109, %v105
  %v162 = vpack.c.b16 %v114, %v110
  %v163 = vpack.c.b16 %v115, %v111
  %v164 = vpack.c.b16 %v116, %v112
  %v165 = vpack.c.b16 %v117, %v113
  %v166 = vpack.c.b16 %v122, %v118
  %v167 = vpack.c.b16 %v123, %v119
  %v168 = vpack.c.b16 %v124, %v120
  %v169 = vpack.c.b16 %v125, %v121
  %v170 = vpack.c.b16 %v130, %v126
  %v171 = vpack.c.b16 %v131, %v127
  %v172 = vpack.c.b16 %v132, %v128
  %v173 = vpack.c.b16 %v133, %v129
  %v174 = vpack.c.b16 %v138, %v134
  %v175 = vpack.c.b16 %v139, %v135
  %v176 = vpack.c.b16 %v140, %v136
  %v177 = vpack.c.b16 %v141, %v137
  %v178 = vpack.c.b16 %v146, %v142
  %v179 = vpack.c.b16 %v147, %v143
  %v180 = vpack.c.b16 %v148, %v144
  %v181 = vpack.c.b16 %v149, %v145
  %214 = vmatprep.subr.bf16.mxu0 %v179
  %215 = vmatpush1.bf16.msra.mxu0 %v178
  %216 = vmatprep.subr.bf16.mxu0 %v175
  %217 = vmatpush1.bf16.msra.mxu0 %v174
  %218 = vmatprep.subr.bf16.mxu0 %v171
  %219 = vmatpush1.bf16.msra.mxu0 %v170
  %220 = vmatprep.subr.bf16.mxu0 %v167
  %221 = vmatpush1.bf16.msra.mxu0 %v166
  %222 = vmatprep.subr.bf16.mxu0 %v163
  %223 = vmatpush1.bf16.msra.mxu0 %v162
  %224 = vmatprep.subr.bf16.mxu0 %v159
  %225 = vmatpush1.bf16.msra.mxu0 %v158
  %226 = vmatprep.subr.bf16.mxu0 %v155
  %227 = vmatpush1.bf16.msra.mxu0 %v154
  %228 = vmatprep.subr.bf16.mxu0 %v151
  %229 = vmatpush1.bf16.msra.mxu0 %v150
  %230 = vmatprep.subr.bf16.mxu0 0
  %231 = vmatpush2.bf16.msra.mxu0 0
  %232 = vmatprep.subr.bf16.mxu0 0
  %233 = vmatpush2.bf16.msra.mxu0 0
  %234 = vmatprep.subr.bf16.mxu0 0
  %235 = vmatpush2.bf16.msra.mxu0 0
  %236 = vmatprep.subr.bf16.mxu0 0
  %237 = vmatpush2.bf16.msra.mxu0 0
  %238 = vmatprep.subr.bf16.mxu0 0
  %239 = vmatpush2.bf16.msra.mxu0 0
  %240 = vmatprep.subr.bf16.mxu0 0
  %241 = vmatpush2.bf16.msra.mxu0 0
  %242 = vmatprep.subr.bf16.mxu0 0
  %243 = vmatpush2.bf16.msra.mxu0 0
  %244 = vmatprep.subr.bf16.mxu0 0
  %245 = vmatpush2.bf16.msra.mxu0 0
  %246 = vmatprep.mubr.bf16.mxu0 0
  %247 = vmatmul.mubr.bf16.gmra.mxu0 %v53
  %v248 = vpop.f32.mrf.mxu0
  %v249 = vadd.f32 0.0, %v248
  %v250 = vpop.f32.mrf.mxu0
  %v251 = vadd.f32 0.0, %v250
  %v252 = vpop.f32.mrf.mxu0
  %v253 = vpop.f32.mrf.mxu0
  %254 = vdwg.mxu0
  %255 = vmatprep.subr.bf16.mxu0 %v181
  %256 = vmatpush1.bf16.msra.mxu0 %v180
  %257 = vmatprep.subr.bf16.mxu0 %v177
  %258 = vmatpush1.bf16.msra.mxu0 %v176
  %259 = vmatprep.subr.bf16.mxu0 %v173
  %260 = vmatpush1.bf16.msra.mxu0 %v172
  %261 = vmatprep.subr.bf16.mxu0 %v169
  %262 = vmatpush1.bf16.msra.mxu0 %v168
  %263 = vmatprep.subr.bf16.mxu0 %v165
  %264 = vmatpush1.bf16.msra.mxu0 %v164
  %265 = vmatprep.subr.bf16.mxu0 %v161
  %266 = vmatpush1.bf16.msra.mxu0 %v160
  %267 = vmatprep.subr.bf16.mxu0 %v157
  %268 = vmatpush1.bf16.msra.mxu0 %v156
  %269 = vmatprep.subr.bf16.mxu0 %v153
  %270 = vmatpush1.bf16.msra.mxu0 %v152
  %271 = vmatprep.subr.bf16.mxu0 0
  %272 = vmatpush2.bf16.msra.mxu0 0
  %273 = vmatprep.subr.bf16.mxu0 0
  %274 = vmatpush2.bf16.msra.mxu0 0
  %275 = vmatprep.subr.bf16.mxu0 0
  %276 = vmatpush2.bf16.msra.mxu0 0
  %277 = vmatprep.subr.bf16.mxu0 0
  %278 = vmatpush2.bf16.msra.mxu0 0
  %279 = vmatprep.subr.bf16.mxu0 0
  %280 = vmatpush2.bf16.msra.mxu0 0
  %281 = vmatprep.subr.bf16.mxu0 0
  %282 = vmatpush2.bf16.msra.mxu0 0
  %283 = vmatprep.subr.bf16.mxu0 0
  %284 = vmatpush2.bf16.msra.mxu0 0
  %285 = vmatprep.subr.bf16.mxu0 0
  %286 = vmatpush2.bf16.msra.mxu0 0
  %287 = vmatprep.mubr.bf16.mxu0 0
  %288 = vmatmul.mubr.bf16.gmra.mxu0 %v53
  %v289 = vpop.f32.mrf.mxu0
  %v290 = vadd.f32 0.0, %v289
  %v291 = vpop.f32.mrf.mxu0
  %v292 = vadd.f32 0.0, %v291
  %v293 = vpop.f32.mrf.mxu0
  %v294 = vpop.f32.mrf.mxu0
  %295 = vdwg.mxu0
  %v296 = vadd.f32 %v49, %v249
  %v297 = vadd.f32 %v50, %v251
  %v298 = vadd.f32 %v51, %v290
  %v299 = vadd.f32 %v52, %v292
  %v300 = vxor.u32 %v296, 2147483648
  %v301 = vxor.u32 %v297, 2147483648
  %v302 = vxor.u32 %v298, 2147483648
  %v303 = vmul.f32 %v300, 1.442695
  %v304 = vpow.pop %v303
  %v305 = vmul.f32 %v301, 1.442695
  %v306 = vpow.pop %v305
  %v307 = vmul.f32 %v302, 1.442695
  %v308 = vpow.pop %v307
  %v309 = vadd.f32 %v304, 1.0
  %v310 = vadd.f32 %v306, 1.0
  %v311 = vadd.f32 %v308, 1.0
  %v312 = vrcp.pop %v309
  %v313 = vmul.f32 1.0, %v312
  %v314 = vrcp.pop %v310
  %v315 = vmul.f32 1.0, %v314
  %v316 = vrcp.pop %v311
  %v317 = vmul.f32 1.0, %v316
  %v318 = vtanh.pop %v299
  %v319 = vmul.f32 %v315, %v16
  %v320 = vmul.f32 %v313, %v318
  %v321 = vadd.f32 %v319, %v320
  %v322 = vtanh.pop %v321
  %v323 = vmul.f32 %v317, %v322
  %v324 = vpack.c.bf16 %v323, %v323
  %325 = vst [vmem:[%s3] sm:$0xf] %v324
  %s326 = scalar_lea.vmem %s1, 32
  %v327 = vld [vmem:[%s326] sm:$0xff]
  %v328 = vld [vmem:[%s326 + $0x8] sm:$0xff]
  %v329 = vld [vmem:[%s326 + $0x10] sm:$0xff]
  %v330 = vld [vmem:[%s326 + $0x18] sm:$0xff]
  %331 = vmatprep.subr.bf16.mxu0 %v179
  %332 = vmatpush1.bf16.msra.mxu0 %v178
  %333 = vmatprep.subr.bf16.mxu0 %v175
  %334 = vmatpush1.bf16.msra.mxu0 %v174
  %335 = vmatprep.subr.bf16.mxu0 %v171
  %336 = vmatpush1.bf16.msra.mxu0 %v170
  %337 = vmatprep.subr.bf16.mxu0 %v167
  %338 = vmatpush1.bf16.msra.mxu0 %v166
  %339 = vmatprep.subr.bf16.mxu0 %v163
  %340 = vmatpush1.bf16.msra.mxu0 %v162
  %341 = vmatprep.subr.bf16.mxu0 %v159
  %342 = vmatpush1.bf16.msra.mxu0 %v158
  %343 = vmatprep.subr.bf16.mxu0 %v155
  %344 = vmatpush1.bf16.msra.mxu0 %v154
  %345 = vmatprep.subr.bf16.mxu0 %v151
  %346 = vmatpush1.bf16.msra.mxu0 %v150
  %347 = vmatprep.subr.bf16.mxu0 0
  %348 = vmatpush2.bf16.msra.mxu0 0
  %349 = vmatprep.subr.bf16.mxu0 0
  %350 = vmatpush2.bf16.msra.mxu0 0
  %351 = vmatprep.subr.bf16.mxu0 0
  %352 = vmatpush2.bf16.msra.mxu0 0
  %353 = vmatprep.subr.bf16.mxu0 0
  %354 = vmatpush2.bf16.msra.mxu0 0
  %355 = vmatprep.subr.bf16.mxu0 0
  %356 = vmatpush2.bf16.msra.mxu0 0
  %357 = vmatprep.subr.bf16.mxu0 0
  %358 = vmatpush2.bf16.msra.mxu0 0
  %359 = vmatprep.subr.bf16.mxu0 0
  %360 = vmatpush2.bf16.msra.mxu0 0
  %361 = vmatprep.subr.bf16.mxu0 0
  %362 = vmatpush2.bf16.msra.mxu0 0
  %363 = vmatprep.mubr.bf16.mxu0 0
  %364 = vmatmul.mubr.bf16.gmra.mxu0 %v324
  %v365 = vpop.f32.mrf.mxu0
  %v366 = vadd.f32 0.0, %v365
  %v367 = vpop.f32.mrf.mxu0
  %v368 = vadd.f32 0.0, %v367
  %v369 = vpop.f32.mrf.mxu0
  %v370 = vpop.f32.mrf.mxu0
  %371 = vdwg.mxu0
  %372 = vmatprep.subr.bf16.mxu0 %v181
  %373 = vmatpush1.bf16.msra.mxu0 %v180
  %374 = vmatprep.subr.bf16.mxu0 %v177
  %375 = vmatpush1.bf16.msra.mxu0 %v176
  %376 = vmatprep.subr.bf16.mxu0 %v173
  %377 = vmatpush1.bf16.msra.mxu0 %v172
  %378 = vmatprep.subr.bf16.mxu0 %v169
  %379 = vmatpush1.bf16.msra.mxu0 %v168
  %380 = vmatprep.subr.bf16.mxu0 %v165
  %381 = vmatpush1.bf16.msra.mxu0 %v164
  %382 = vmatprep.subr.bf16.mxu0 %v161
  %383 = vmatpush1.bf16.msra.mxu0 %v160
  %384 = vmatprep.subr.bf16.mxu0 %v157
  %385 = vmatpush1.bf16.msra.mxu0 %v156
  %386 = vmatprep.subr.bf16.mxu0 %v153
  %387 = vmatpush1.bf16.msra.mxu0 %v152
  %388 = vmatprep.subr.bf16.mxu0 0
  %389 = vmatpush2.bf16.msra.mxu0 0
  %390 = vmatprep.subr.bf16.mxu0 0
  %391 = vmatpush2.bf16.msra.mxu0 0
  %392 = vmatprep.subr.bf16.mxu0 0
  %393 = vmatpush2.bf16.msra.mxu0 0
  %394 = vmatprep.subr.bf16.mxu0 0
  %395 = vmatpush2.bf16.msra.mxu0 0
  %396 = vmatprep.subr.bf16.mxu0 0
  %397 = vmatpush2.bf16.msra.mxu0 0
  %398 = vmatprep.subr.bf16.mxu0 0
  %399 = vmatpush2.bf16.msra.mxu0 0
  %400 = vmatprep.subr.bf16.mxu0 0
  %401 = vmatpush2.bf16.msra.mxu0 0
  %402 = vmatprep.subr.bf16.mxu0 0
  %403 = vmatpush2.bf16.msra.mxu0 0
  %404 = vmatprep.mubr.bf16.mxu0 0
  %405 = vmatmul.mubr.bf16.gmra.mxu0 %v324
  %v406 = vpop.f32.mrf.mxu0
  %v407 = vadd.f32 0.0, %v406
  %v408 = vpop.f32.mrf.mxu0
  %v409 = vadd.f32 0.0, %v408
  %v410 = vpop.f32.mrf.mxu0
  %v411 = vpop.f32.mrf.mxu0
  %412 = vdwg.mxu0
  %v413 = vadd.f32 %v327, %v366
  %v414 = vadd.f32 %v328, %v368
  %v415 = vadd.f32 %v329, %v407
  %v416 = vadd.f32 %v330, %v409
  %v417 = vxor.u32 %v413, 2147483648
  %v418 = vxor.u32 %v414, 2147483648
  %v419 = vxor.u32 %v415, 2147483648
  %v420 = vmul.f32 %v417, 1.442695
  %v421 = vpow.pop %v420
  %v422 = vmul.f32 %v418, 1.442695
  %v423 = vpow.pop %v422
  %v424 = vmul.f32 %v419, 1.442695
  %v425 = vpow.pop %v424
  %v426 = vadd.f32 %v421, 1.0
  %v427 = vadd.f32 %v423, 1.0
  %v428 = vadd.f32 %v425, 1.0
  %v429 = vrcp.pop %v426
  %v430 = vmul.f32 1.0, %v429
  %v431 = vrcp.pop %v427
  %v432 = vmul.f32 1.0, %v431
  %v433 = vrcp.pop %v428
  %v434 = vmul.f32 1.0, %v433
  %v435 = vtanh.pop %v416
  %v436 = vmul.f32 %v432, %v321
  %v437 = vmul.f32 %v430, %v435
  %v438 = vadd.f32 %v436, %v437
  %v439 = vtanh.pop %v438
  %v440 = vmul.f32 %v434, %v439
  %v441 = vpack.c.bf16 %v440, %v440
  %s442 = scalar_lea.vmem %s3, 4
  %443 = vst [vmem:[%s442] sm:$0xf] %v441
  %s444 = scalar_lea.vmem %s1, 64
  %v445 = vld [vmem:[%s444] sm:$0xff]
  %v446 = vld [vmem:[%s444 + $0x8] sm:$0xff]
  %v447 = vld [vmem:[%s444 + $0x10] sm:$0xff]
  %v448 = vld [vmem:[%s444 + $0x18] sm:$0xff]
  %449 = vmatprep.subr.bf16.mxu0 %v179
  %450 = vmatpush1.bf16.msra.mxu0 %v178
  %451 = vmatprep.subr.bf16.mxu0 %v175
  %452 = vmatpush1.bf16.msra.mxu0 %v174
  %453 = vmatprep.subr.bf16.mxu0 %v171
  %454 = vmatpush1.bf16.msra.mxu0 %v170
  %455 = vmatprep.subr.bf16.mxu0 %v167
  %456 = vmatpush1.bf16.msra.mxu0 %v166
  %457 = vmatprep.subr.bf16.mxu0 %v163
  %458 = vmatpush1.bf16.msra.mxu0 %v162
  %459 = vmatprep.subr.bf16.mxu0 %v159
  %460 = vmatpush1.bf16.msra.mxu0 %v158
  %461 = vmatprep.subr.bf16.mxu0 %v155
  %462 = vmatpush1.bf16.msra.mxu0 %v154
  %463 = vmatprep.subr.bf16.mxu0 %v151
  %464 = vmatpush1.bf16.msra.mxu0 %v150
  %465 = vmatprep.subr.bf16.mxu0 0
  %466 = vmatpush2.bf16.msra.mxu0 0
  %467 = vmatprep.subr.bf16.mxu0 0
  %468 = vmatpush2.bf16.msra.mxu0 0
  %469 = vmatprep.subr.bf16.mxu0 0
  %470 = vmatpush2.bf16.msra.mxu0 0
  %471 = vmatprep.subr.bf16.mxu0 0
  %472 = vmatpush2.bf16.msra.mxu0 0
  %473 = vmatprep.subr.bf16.mxu0 0
  %474 = vmatpush2.bf16.msra.mxu0 0
  %475 = vmatprep.subr.bf16.mxu0 0
  %476 = vmatpush2.bf16.msra.mxu0 0
  %477 = vmatprep.subr.bf16.mxu0 0
  %478 = vmatpush2.bf16.msra.mxu0 0
  %479 = vmatprep.subr.bf16.mxu0 0
  %480 = vmatpush2.bf16.msra.mxu0 0
  %481 = vmatprep.mubr.bf16.mxu0 0
  %482 = vmatmul.mubr.bf16.gmra.mxu0 %v441
  %v483 = vpop.f32.mrf.mxu0
  %v484 = vadd.f32 0.0, %v483
  %v485 = vpop.f32.mrf.mxu0
  %v486 = vadd.f32 0.0, %v485
  %v487 = vpop.f32.mrf.mxu0
  %v488 = vpop.f32.mrf.mxu0
  %489 = vdwg.mxu0
  %490 = vmatprep.subr.bf16.mxu0 %v181
  %491 = vmatpush1.bf16.msra.mxu0 %v180
  %492 = vmatprep.subr.bf16.mxu0 %v177
  %493 = vmatpush1.bf16.msra.mxu0 %v176
  %494 = vmatprep.subr.bf16.mxu0 %v173
  %495 = vmatpush1.bf16.msra.mxu0 %v172
  %496 = vmatprep.subr.bf16.mxu0 %v169
  %497 = vmatpush1.bf16.msra.mxu0 %v168
  %498 = vmatprep.subr.bf16.mxu0 %v165
  %499 = vmatpush1.bf16.msra.mxu0 %v164
  %500 = vmatprep.subr.bf16.mxu0 %v161
  %501 = vmatpush1.bf16.msra.mxu0 %v160
  %502 = vmatprep.subr.bf16.mxu0 %v157
  %503 = vmatpush1.bf16.msra.mxu0 %v156
  %504 = vmatprep.subr.bf16.mxu0 %v153
  %505 = vmatpush1.bf16.msra.mxu0 %v152
  %506 = vmatprep.subr.bf16.mxu0 0
  %507 = vmatpush2.bf16.msra.mxu0 0
  %508 = vmatprep.subr.bf16.mxu0 0
  %509 = vmatpush2.bf16.msra.mxu0 0
  %510 = vmatprep.subr.bf16.mxu0 0
  %511 = vmatpush2.bf16.msra.mxu0 0
  %512 = vmatprep.subr.bf16.mxu0 0
  %513 = vmatpush2.bf16.msra.mxu0 0
  %514 = vmatprep.subr.bf16.mxu0 0
  %515 = vmatpush2.bf16.msra.mxu0 0
  %516 = vmatprep.subr.bf16.mxu0 0
  %517 = vmatpush2.bf16.msra.mxu0 0
  %518 = vmatprep.subr.bf16.mxu0 0
  %519 = vmatpush2.bf16.msra.mxu0 0
  %520 = vmatprep.subr.bf16.mxu0 0
  %521 = vmatpush2.bf16.msra.mxu0 0
  %522 = vmatprep.mubr.bf16.mxu0 0
  %523 = vmatmul.mubr.bf16.gmra.mxu0 %v441
  %v524 = vpop.f32.mrf.mxu0
  %v525 = vadd.f32 0.0, %v524
  %v526 = vpop.f32.mrf.mxu0
  %v527 = vadd.f32 0.0, %v526
  %v528 = vpop.f32.mrf.mxu0
  %v529 = vpop.f32.mrf.mxu0
  %530 = vdwg.mxu0
  %v531 = vadd.f32 %v445, %v484
  %v532 = vadd.f32 %v446, %v486
  %v533 = vadd.f32 %v447, %v525
  %v534 = vadd.f32 %v448, %v527
  %v535 = vxor.u32 %v531, 2147483648
  %v536 = vxor.u32 %v532, 2147483648
  %v537 = vxor.u32 %v533, 2147483648
  %v538 = vmul.f32 %v535, 1.442695
  %v539 = vpow.pop %v538
  %v540 = vmul.f32 %v536, 1.442695
  %v541 = vpow.pop %v540
  %v542 = vmul.f32 %v537, 1.442695
  %v543 = vpow.pop %v542
  %v544 = vadd.f32 %v539, 1.0
  %v545 = vadd.f32 %v541, 1.0
  %v546 = vadd.f32 %v543, 1.0
  %v547 = vrcp.pop %v544
  %v548 = vmul.f32 1.0, %v547
  %v549 = vrcp.pop %v545
  %v550 = vmul.f32 1.0, %v549
  %v551 = vrcp.pop %v546
  %v552 = vmul.f32 1.0, %v551
  %v553 = vtanh.pop %v534
  %v554 = vmul.f32 %v550, %v438
  %v555 = vmul.f32 %v548, %v553
  %v556 = vadd.f32 %v554, %v555
  %v557 = vtanh.pop %v556
  %v558 = vmul.f32 %v552, %v557
  %v559 = vpack.c.bf16 %v558, %v558
  %s560 = scalar_lea.vmem %s3, 8
  %561 = vst [vmem:[%s560] sm:$0xf] %v559
  %s562 = scalar_lea.vmem %s1, 96
  %v563 = vld [vmem:[%s562] sm:$0xff]
  %v564 = vld [vmem:[%s562 + $0x8] sm:$0xff]
  %v565 = vld [vmem:[%s562 + $0x10] sm:$0xff]
  %v566 = vld [vmem:[%s562 + $0x18] sm:$0xff]
  %567 = vmatprep.subr.bf16.mxu0 %v179
  %568 = vmatpush1.bf16.msra.mxu0 %v178
  %569 = vmatprep.subr.bf16.mxu0 %v175
  %570 = vmatpush1.bf16.msra.mxu0 %v174
  %571 = vmatprep.subr.bf16.mxu0 %v171
  %572 = vmatpush1.bf16.msra.mxu0 %v170
  %573 = vmatprep.subr.bf16.mxu0 %v167
  %574 = vmatpush1.bf16.msra.mxu0 %v166
  %575 = vmatprep.subr.bf16.mxu0 %v163
  %576 = vmatpush1.bf16.msra.mxu0 %v162
  %577 = vmatprep.subr.bf16.mxu0 %v159
  %578 = vmatpush1.bf16.msra.mxu0 %v158
  %579 = vmatprep.subr.bf16.mxu0 %v155
  %580 = vmatpush1.bf16.msra.mxu0 %v154
  %581 = vmatprep.subr.bf16.mxu0 %v151
  %582 = vmatpush1.bf16.msra.mxu0 %v150
  %583 = vmatprep.subr.bf16.mxu0 0
  %584 = vmatpush2.bf16.msra.mxu0 0
  %585 = vmatprep.subr.bf16.mxu0 0
  %586 = vmatpush2.bf16.msra.mxu0 0
  %587 = vmatprep.subr.bf16.mxu0 0
  %588 = vmatpush2.bf16.msra.mxu0 0
  %589 = vmatprep.subr.bf16.mxu0 0
  %590 = vmatpush2.bf16.msra.mxu0 0
  %591 = vmatprep.subr.bf16.mxu0 0
  %592 = vmatpush2.bf16.msra.mxu0 0
  %593 = vmatprep.subr.bf16.mxu0 0
  %594 = vmatpush2.bf16.msra.mxu0 0
  %595 = vmatprep.subr.bf16.mxu0 0
  %596 = vmatpush2.bf16.msra.mxu0 0
  %597 = vmatprep.subr.bf16.mxu0 0
  %598 = vmatpush2.bf16.msra.mxu0 0
  %599 = vmatprep.mubr.bf16.mxu0 0
  %600 = vmatmul.mubr.bf16.gmra.mxu0 %v559
  %v601 = vpop.f32.mrf.mxu0
  %v602 = vadd.f32 0.0, %v601
  %v603 = vpop.f32.mrf.mxu0
  %v604 = vadd.f32 0.0, %v603
  %v605 = vpop.f32.mrf.mxu0
  %v606 = vpop.f32.mrf.mxu0
  %607 = vdwg.mxu0
  %608 = vmatprep.subr.bf16.mxu0 %v181
  %609 = vmatpush1.bf16.msra.mxu0 %v180
  %610 = vmatprep.subr.bf16.mxu0 %v177
  %611 = vmatpush1.bf16.msra.mxu0 %v176
  %612 = vmatprep.subr.bf16.mxu0 %v173
  %613 = vmatpush1.bf16.msra.mxu0 %v172
  %614 = vmatprep.subr.bf16.mxu0 %v169
  %615 = vmatpush1.bf16.msra.mxu0 %v168
  %616 = vmatprep.subr.bf16.mxu0 %v165
  %617 = vmatpush1.bf16.msra.mxu0 %v164
  %618 = vmatprep.subr.bf16.mxu0 %v161
  %619 = vmatpush1.bf16.msra.mxu0 %v160
  %620 = vmatprep.subr.bf16.mxu0 %v157
  %621 = vmatpush1.bf16.msra.mxu0 %v156
  %622 = vmatprep.subr.bf16.mxu0 %v153
  %623 = vmatpush1.bf16.msra.mxu0 %v152
  %624 = vmatprep.subr.bf16.mxu0 0
  %625 = vmatpush2.bf16.msra.mxu0 0
  %626 = vmatprep.subr.bf16.mxu0 0
  %627 = vmatpush2.bf16.msra.mxu0 0
  %628 = vmatprep.subr.bf16.mxu0 0
  %629 = vmatpush2.bf16.msra.mxu0 0
  %630 = vmatprep.subr.bf16.mxu0 0
  %631 = vmatpush2.bf16.msra.mxu0 0
  %632 = vmatprep.subr.bf16.mxu0 0
  %633 = vmatpush2.bf16.msra.mxu0 0
  %634 = vmatprep.subr.bf16.mxu0 0
  %635 = vmatpush2.bf16.msra.mxu0 0
  %636 = vmatprep.subr.bf16.mxu0 0
  %637 = vmatpush2.bf16.msra.mxu0 0
  %638 = vmatprep.subr.bf16.mxu0 0
  %639 = vmatpush2.bf16.msra.mxu0 0
  %640 = vmatprep.mubr.bf16.mxu0 0
  %641 = vmatmul.mubr.bf16.gmra.mxu0 %v559
  %v642 = vpop.f32.mrf.mxu0
  %v643 = vadd.f32 0.0, %v642
  %v644 = vpop.f32.mrf.mxu0
  %v645 = vadd.f32 0.0, %v644
  %v646 = vpop.f32.mrf.mxu0
  %v647 = vpop.f32.mrf.mxu0
  %648 = vdwg.mxu0
  %v649 = vadd.f32 %v563, %v602
  %v650 = vadd.f32 %v564, %v604
  %v651 = vadd.f32 %v565, %v643
  %v652 = vadd.f32 %v566, %v645
  %v653 = vxor.u32 %v649, 2147483648
  %v654 = vxor.u32 %v650, 2147483648
  %v655 = vxor.u32 %v651, 2147483648
  %v656 = vmul.f32 %v653, 1.442695
  %v657 = vpow.pop %v656
  %v658 = vmul.f32 %v654, 1.442695
  %v659 = vpow.pop %v658
  %v660 = vmul.f32 %v655, 1.442695
  %v661 = vpow.pop %v660
  %v662 = vadd.f32 %v657, 1.0
  %v663 = vadd.f32 %v659, 1.0
  %v664 = vadd.f32 %v661, 1.0
  %v665 = vrcp.pop %v662
  %v666 = vmul.f32 1.0, %v665
  %v667 = vrcp.pop %v663
  %v668 = vmul.f32 1.0, %v667
  %v669 = vrcp.pop %v664
  %v670 = vmul.f32 1.0, %v669
  %v671 = vtanh.pop %v652
  %v672 = vmul.f32 %v668, %v556
  %v673 = vmul.f32 %v666, %v671
  %v674 = vadd.f32 %v672, %v673
  %v675 = vtanh.pop %v674
  %v676 = vmul.f32 %v670, %v675
  %v677 = vpack.c.bf16 %v676, %v676
  %s678 = scalar_lea.vmem %s3, 12
  %679 = vst [vmem:[%s678] sm:$0xf] %v677
  %s680 = scalar_lea.vmem %s1, 128
  %v681 = vld [vmem:[%s680] sm:$0xff]
  %v682 = vld [vmem:[%s680 + $0x8] sm:$0xff]
  %v683 = vld [vmem:[%s680 + $0x10] sm:$0xff]
  %v684 = vld [vmem:[%s680 + $0x18] sm:$0xff]
  %685 = vmatprep.subr.bf16.mxu0 %v179
  %686 = vmatpush1.bf16.msra.mxu0 %v178
  %687 = vmatprep.subr.bf16.mxu0 %v175
  %688 = vmatpush1.bf16.msra.mxu0 %v174
  %689 = vmatprep.subr.bf16.mxu0 %v171
  %690 = vmatpush1.bf16.msra.mxu0 %v170
  %691 = vmatprep.subr.bf16.mxu0 %v167
  %692 = vmatpush1.bf16.msra.mxu0 %v166
  %693 = vmatprep.subr.bf16.mxu0 %v163
  %694 = vmatpush1.bf16.msra.mxu0 %v162
  %695 = vmatprep.subr.bf16.mxu0 %v159
  %696 = vmatpush1.bf16.msra.mxu0 %v158
  %697 = vmatprep.subr.bf16.mxu0 %v155
  %698 = vmatpush1.bf16.msra.mxu0 %v154
  %699 = vmatprep.subr.bf16.mxu0 %v151
  %700 = vmatpush1.bf16.msra.mxu0 %v150
  %701 = vmatprep.subr.bf16.mxu0 0
  %702 = vmatpush2.bf16.msra.mxu0 0
  %703 = vmatprep.subr.bf16.mxu0 0
  %704 = vmatpush2.bf16.msra.mxu0 0
  %705 = vmatprep.subr.bf16.mxu0 0
  %706 = vmatpush2.bf16.msra.mxu0 0
  %707 = vmatprep.subr.bf16.mxu0 0
  %708 = vmatpush2.bf16.msra.mxu0 0
  %709 = vmatprep.subr.bf16.mxu0 0
  %710 = vmatpush2.bf16.msra.mxu0 0
  %711 = vmatprep.subr.bf16.mxu0 0
  %712 = vmatpush2.bf16.msra.mxu0 0
  %713 = vmatprep.subr.bf16.mxu0 0
  %714 = vmatpush2.bf16.msra.mxu0 0
  %715 = vmatprep.subr.bf16.mxu0 0
  %716 = vmatpush2.bf16.msra.mxu0 0
  %717 = vmatprep.mubr.bf16.mxu0 0
  %718 = vmatmul.mubr.bf16.gmra.mxu0 %v677
  %v719 = vpop.f32.mrf.mxu0
  %v720 = vadd.f32 0.0, %v719
  %v721 = vpop.f32.mrf.mxu0
  %v722 = vadd.f32 0.0, %v721
  %v723 = vpop.f32.mrf.mxu0
  %v724 = vpop.f32.mrf.mxu0
  %725 = vdwg.mxu0
  %726 = vmatprep.subr.bf16.mxu0 %v181
  %727 = vmatpush1.bf16.msra.mxu0 %v180
  %728 = vmatprep.subr.bf16.mxu0 %v177
  %729 = vmatpush1.bf16.msra.mxu0 %v176
  %730 = vmatprep.subr.bf16.mxu0 %v173
  %731 = vmatpush1.bf16.msra.mxu0 %v172
  %732 = vmatprep.subr.bf16.mxu0 %v169
  %733 = vmatpush1.bf16.msra.mxu0 %v168
  %734 = vmatprep.subr.bf16.mxu0 %v165
  %735 = vmatpush1.bf16.msra.mxu0 %v164
  %736 = vmatprep.subr.bf16.mxu0 %v161
  %737 = vmatpush1.bf16.msra.mxu0 %v160
  %738 = vmatprep.subr.bf16.mxu0 %v157
  %739 = vmatpush1.bf16.msra.mxu0 %v156
  %740 = vmatprep.subr.bf16.mxu0 %v153
  %741 = vmatpush1.bf16.msra.mxu0 %v152
  %742 = vmatprep.subr.bf16.mxu0 0
  %743 = vmatpush2.bf16.msra.mxu0 0
  %744 = vmatprep.subr.bf16.mxu0 0
  %745 = vmatpush2.bf16.msra.mxu0 0
  %746 = vmatprep.subr.bf16.mxu0 0
  %747 = vmatpush2.bf16.msra.mxu0 0
  %748 = vmatprep.subr.bf16.mxu0 0
  %749 = vmatpush2.bf16.msra.mxu0 0
  %750 = vmatprep.subr.bf16.mxu0 0
  %751 = vmatpush2.bf16.msra.mxu0 0
  %752 = vmatprep.subr.bf16.mxu0 0
  %753 = vmatpush2.bf16.msra.mxu0 0
  %754 = vmatprep.subr.bf16.mxu0 0
  %755 = vmatpush2.bf16.msra.mxu0 0
  %756 = vmatprep.subr.bf16.mxu0 0
  %757 = vmatpush2.bf16.msra.mxu0 0
  %758 = vmatprep.mubr.bf16.mxu0 0
  %759 = vmatmul.mubr.bf16.gmra.mxu0 %v677
  %v760 = vpop.f32.mrf.mxu0
  %v761 = vadd.f32 0.0, %v760
  %v762 = vpop.f32.mrf.mxu0
  %v763 = vadd.f32 0.0, %v762
  %v764 = vpop.f32.mrf.mxu0
  %v765 = vpop.f32.mrf.mxu0
  %766 = vdwg.mxu0
  %v767 = vadd.f32 %v681, %v720
  %v768 = vadd.f32 %v682, %v722
  %v769 = vadd.f32 %v683, %v761
  %v770 = vadd.f32 %v684, %v763
  %v771 = vxor.u32 %v767, 2147483648
  %v772 = vxor.u32 %v768, 2147483648
  %v773 = vxor.u32 %v769, 2147483648
  %v774 = vmul.f32 %v771, 1.442695
  %v775 = vpow.pop %v774
  %v776 = vmul.f32 %v772, 1.442695
  %v777 = vpow.pop %v776
  %v778 = vmul.f32 %v773, 1.442695
  %v779 = vpow.pop %v778
  %v780 = vadd.f32 %v775, 1.0
  %v781 = vadd.f32 %v777, 1.0
  %v782 = vadd.f32 %v779, 1.0
  %v783 = vrcp.pop %v780
  %v784 = vmul.f32 1.0, %v783
  %v785 = vrcp.pop %v781
  %v786 = vmul.f32 1.0, %v785
  %v787 = vrcp.pop %v782
  %v788 = vmul.f32 1.0, %v787
  %v789 = vtanh.pop %v770
  %v790 = vmul.f32 %v786, %v674
  %v791 = vmul.f32 %v784, %v789
  %v792 = vadd.f32 %v790, %v791
  %v793 = vtanh.pop %v792
  %v794 = vmul.f32 %v788, %v793
  %v795 = vpack.c.bf16 %v794, %v794
  %s796 = scalar_lea.vmem %s3, 16
  %797 = vst [vmem:[%s796] sm:$0xf] %v795
  %s798 = scalar_lea.vmem %s1, 160
  %v799 = vld [vmem:[%s798] sm:$0xff]
  %v800 = vld [vmem:[%s798 + $0x8] sm:$0xff]
  %v801 = vld [vmem:[%s798 + $0x10] sm:$0xff]
  %v802 = vld [vmem:[%s798 + $0x18] sm:$0xff]
  %803 = vmatprep.subr.bf16.mxu0 %v179
  %804 = vmatpush1.bf16.msra.mxu0 %v178
  %805 = vmatprep.subr.bf16.mxu0 %v175
  %806 = vmatpush1.bf16.msra.mxu0 %v174
  %807 = vmatprep.subr.bf16.mxu0 %v171
  %808 = vmatpush1.bf16.msra.mxu0 %v170
  %809 = vmatprep.subr.bf16.mxu0 %v167
  %810 = vmatpush1.bf16.msra.mxu0 %v166
  %811 = vmatprep.subr.bf16.mxu0 %v163
  %812 = vmatpush1.bf16.msra.mxu0 %v162
  %813 = vmatprep.subr.bf16.mxu0 %v159
  %814 = vmatpush1.bf16.msra.mxu0 %v158
  %815 = vmatprep.subr.bf16.mxu0 %v155
  %816 = vmatpush1.bf16.msra.mxu0 %v154
  %817 = vmatprep.subr.bf16.mxu0 %v151
  %818 = vmatpush1.bf16.msra.mxu0 %v150
  %819 = vmatprep.subr.bf16.mxu0 0
  %820 = vmatpush2.bf16.msra.mxu0 0
  %821 = vmatprep.subr.bf16.mxu0 0
  %822 = vmatpush2.bf16.msra.mxu0 0
  %823 = vmatprep.subr.bf16.mxu0 0
  %824 = vmatpush2.bf16.msra.mxu0 0
  %825 = vmatprep.subr.bf16.mxu0 0
  %826 = vmatpush2.bf16.msra.mxu0 0
  %827 = vmatprep.subr.bf16.mxu0 0
  %828 = vmatpush2.bf16.msra.mxu0 0
  %829 = vmatprep.subr.bf16.mxu0 0
  %830 = vmatpush2.bf16.msra.mxu0 0
  %831 = vmatprep.subr.bf16.mxu0 0
  %832 = vmatpush2.bf16.msra.mxu0 0
  %833 = vmatprep.subr.bf16.mxu0 0
  %834 = vmatpush2.bf16.msra.mxu0 0
  %835 = vmatprep.mubr.bf16.mxu0 0
  %836 = vmatmul.mubr.bf16.gmra.mxu0 %v795
  %v837 = vpop.f32.mrf.mxu0
  %v838 = vadd.f32 0.0, %v837
  %v839 = vpop.f32.mrf.mxu0
  %v840 = vadd.f32 0.0, %v839
  %v841 = vpop.f32.mrf.mxu0
  %v842 = vpop.f32.mrf.mxu0
  %843 = vdwg.mxu0
  %844 = vmatprep.subr.bf16.mxu0 %v181
  %845 = vmatpush1.bf16.msra.mxu0 %v180
  %846 = vmatprep.subr.bf16.mxu0 %v177
  %847 = vmatpush1.bf16.msra.mxu0 %v176
  %848 = vmatprep.subr.bf16.mxu0 %v173
  %849 = vmatpush1.bf16.msra.mxu0 %v172
  %850 = vmatprep.subr.bf16.mxu0 %v169
  %851 = vmatpush1.bf16.msra.mxu0 %v168
  %852 = vmatprep.subr.bf16.mxu0 %v165
  %853 = vmatpush1.bf16.msra.mxu0 %v164
  %854 = vmatprep.subr.bf16.mxu0 %v161
  %855 = vmatpush1.bf16.msra.mxu0 %v160
  %856 = vmatprep.subr.bf16.mxu0 %v157
  %857 = vmatpush1.bf16.msra.mxu0 %v156
  %858 = vmatprep.subr.bf16.mxu0 %v153
  %859 = vmatpush1.bf16.msra.mxu0 %v152
  %860 = vmatprep.subr.bf16.mxu0 0
  %861 = vmatpush2.bf16.msra.mxu0 0
  %862 = vmatprep.subr.bf16.mxu0 0
  %863 = vmatpush2.bf16.msra.mxu0 0
  %864 = vmatprep.subr.bf16.mxu0 0
  %865 = vmatpush2.bf16.msra.mxu0 0
  %866 = vmatprep.subr.bf16.mxu0 0
  %867 = vmatpush2.bf16.msra.mxu0 0
  %868 = vmatprep.subr.bf16.mxu0 0
  %869 = vmatpush2.bf16.msra.mxu0 0
  %870 = vmatprep.subr.bf16.mxu0 0
  %871 = vmatpush2.bf16.msra.mxu0 0
  %872 = vmatprep.subr.bf16.mxu0 0
  %873 = vmatpush2.bf16.msra.mxu0 0
  %874 = vmatprep.subr.bf16.mxu0 0
  %875 = vmatpush2.bf16.msra.mxu0 0
  %876 = vmatprep.mubr.bf16.mxu0 0
  %877 = vmatmul.mubr.bf16.gmra.mxu0 %v795
  %v878 = vpop.f32.mrf.mxu0
  %v879 = vadd.f32 0.0, %v878
  %v880 = vpop.f32.mrf.mxu0
  %v881 = vadd.f32 0.0, %v880
  %v882 = vpop.f32.mrf.mxu0
  %v883 = vpop.f32.mrf.mxu0
  %884 = vdwg.mxu0
  %v885 = vadd.f32 %v799, %v838
  %v886 = vadd.f32 %v800, %v840
  %v887 = vadd.f32 %v801, %v879
  %v888 = vadd.f32 %v802, %v881
  %v889 = vxor.u32 %v885, 2147483648
  %v890 = vxor.u32 %v886, 2147483648
  %v891 = vxor.u32 %v887, 2147483648
  %v892 = vmul.f32 %v889, 1.442695
  %v893 = vpow.pop %v892
  %v894 = vmul.f32 %v890, 1.442695
  %v895 = vpow.pop %v894
  %v896 = vmul.f32 %v891, 1.442695
  %v897 = vpow.pop %v896
  %v898 = vadd.f32 %v893, 1.0
  %v899 = vadd.f32 %v895, 1.0
  %v900 = vadd.f32 %v897, 1.0
  %v901 = vrcp.pop %v898
  %v902 = vmul.f32 1.0, %v901
  %v903 = vrcp.pop %v899
  %v904 = vmul.f32 1.0, %v903
  %v905 = vrcp.pop %v900
  %v906 = vmul.f32 1.0, %v905
  %v907 = vtanh.pop %v888
  %v908 = vmul.f32 %v904, %v792
  %v909 = vmul.f32 %v902, %v907
  %v910 = vadd.f32 %v908, %v909
  %v911 = vtanh.pop %v910
  %v912 = vmul.f32 %v906, %v911
  %v913 = vpack.c.bf16 %v912, %v912
  %s914 = scalar_lea.vmem %s3, 20
  %915 = vst [vmem:[%s914] sm:$0xf] %v913
  %s916 = scalar_lea.vmem %s1, 192
  %v917 = vld [vmem:[%s916] sm:$0xff]
  %v918 = vld [vmem:[%s916 + $0x8] sm:$0xff]
  %v919 = vld [vmem:[%s916 + $0x10] sm:$0xff]
  %v920 = vld [vmem:[%s916 + $0x18] sm:$0xff]
  %921 = vmatprep.subr.bf16.mxu0 %v179
  %922 = vmatpush1.bf16.msra.mxu0 %v178
  %923 = vmatprep.subr.bf16.mxu0 %v175
  %924 = vmatpush1.bf16.msra.mxu0 %v174
  %925 = vmatprep.subr.bf16.mxu0 %v171
  %926 = vmatpush1.bf16.msra.mxu0 %v170
  %927 = vmatprep.subr.bf16.mxu0 %v167
  %928 = vmatpush1.bf16.msra.mxu0 %v166
  %929 = vmatprep.subr.bf16.mxu0 %v163
  %930 = vmatpush1.bf16.msra.mxu0 %v162
  %931 = vmatprep.subr.bf16.mxu0 %v159
  %932 = vmatpush1.bf16.msra.mxu0 %v158
  %933 = vmatprep.subr.bf16.mxu0 %v155
  %934 = vmatpush1.bf16.msra.mxu0 %v154
  %935 = vmatprep.subr.bf16.mxu0 %v151
  %936 = vmatpush1.bf16.msra.mxu0 %v150
  %937 = vmatprep.subr.bf16.mxu0 0
  %938 = vmatpush2.bf16.msra.mxu0 0
  %939 = vmatprep.subr.bf16.mxu0 0
  %940 = vmatpush2.bf16.msra.mxu0 0
  %941 = vmatprep.subr.bf16.mxu0 0
  %942 = vmatpush2.bf16.msra.mxu0 0
  %943 = vmatprep.subr.bf16.mxu0 0
  %944 = vmatpush2.bf16.msra.mxu0 0
  %945 = vmatprep.subr.bf16.mxu0 0
  %946 = vmatpush2.bf16.msra.mxu0 0
  %947 = vmatprep.subr.bf16.mxu0 0
  %948 = vmatpush2.bf16.msra.mxu0 0
  %949 = vmatprep.subr.bf16.mxu0 0
  %950 = vmatpush2.bf16.msra.mxu0 0
  %951 = vmatprep.subr.bf16.mxu0 0
  %952 = vmatpush2.bf16.msra.mxu0 0
  %953 = vmatprep.mubr.bf16.mxu0 0
  %954 = vmatmul.mubr.bf16.gmra.mxu0 %v913
  %v955 = vpop.f32.mrf.mxu0
  %v956 = vadd.f32 0.0, %v955
  %v957 = vpop.f32.mrf.mxu0
  %v958 = vadd.f32 0.0, %v957
  %v959 = vpop.f32.mrf.mxu0
  %v960 = vpop.f32.mrf.mxu0
  %961 = vdwg.mxu0
  %962 = vmatprep.subr.bf16.mxu0 %v181
  %963 = vmatpush1.bf16.msra.mxu0 %v180
  %964 = vmatprep.subr.bf16.mxu0 %v177
  %965 = vmatpush1.bf16.msra.mxu0 %v176
  %966 = vmatprep.subr.bf16.mxu0 %v173
  %967 = vmatpush1.bf16.msra.mxu0 %v172
  %968 = vmatprep.subr.bf16.mxu0 %v169
  %969 = vmatpush1.bf16.msra.mxu0 %v168
  %970 = vmatprep.subr.bf16.mxu0 %v165
  %971 = vmatpush1.bf16.msra.mxu0 %v164
  %972 = vmatprep.subr.bf16.mxu0 %v161
  %973 = vmatpush1.bf16.msra.mxu0 %v160
  %974 = vmatprep.subr.bf16.mxu0 %v157
  %975 = vmatpush1.bf16.msra.mxu0 %v156
  %976 = vmatprep.subr.bf16.mxu0 %v153
  %977 = vmatpush1.bf16.msra.mxu0 %v152
  %978 = vmatprep.subr.bf16.mxu0 0
  %979 = vmatpush2.bf16.msra.mxu0 0
  %980 = vmatprep.subr.bf16.mxu0 0
  %981 = vmatpush2.bf16.msra.mxu0 0
  %982 = vmatprep.subr.bf16.mxu0 0
  %983 = vmatpush2.bf16.msra.mxu0 0
  %984 = vmatprep.subr.bf16.mxu0 0
  %985 = vmatpush2.bf16.msra.mxu0 0
  %986 = vmatprep.subr.bf16.mxu0 0
  %987 = vmatpush2.bf16.msra.mxu0 0
  %988 = vmatprep.subr.bf16.mxu0 0
  %989 = vmatpush2.bf16.msra.mxu0 0
  %990 = vmatprep.subr.bf16.mxu0 0
  %991 = vmatpush2.bf16.msra.mxu0 0
  %992 = vmatprep.subr.bf16.mxu0 0
  %993 = vmatpush2.bf16.msra.mxu0 0
  %994 = vmatprep.mubr.bf16.mxu0 0
  %995 = vmatmul.mubr.bf16.gmra.mxu0 %v913
  %v996 = vpop.f32.mrf.mxu0
  %v997 = vadd.f32 0.0, %v996
  %v998 = vpop.f32.mrf.mxu0
  %v999 = vadd.f32 0.0, %v998
  %v1000 = vpop.f32.mrf.mxu0
  %v1001 = vpop.f32.mrf.mxu0
  %1002 = vdwg.mxu0
  %v1003 = vadd.f32 %v917, %v956
  %v1004 = vadd.f32 %v918, %v958
  %v1005 = vadd.f32 %v919, %v997
  %v1006 = vadd.f32 %v920, %v999
  %v1007 = vxor.u32 %v1003, 2147483648
  %v1008 = vxor.u32 %v1004, 2147483648
  %v1009 = vxor.u32 %v1005, 2147483648
  %v1010 = vmul.f32 %v1007, 1.442695
  %v1011 = vpow.pop %v1010
  %v1012 = vmul.f32 %v1008, 1.442695
  %v1013 = vpow.pop %v1012
  %v1014 = vmul.f32 %v1009, 1.442695
  %v1015 = vpow.pop %v1014
  %v1016 = vadd.f32 %v1011, 1.0
  %v1017 = vadd.f32 %v1013, 1.0
  %v1018 = vadd.f32 %v1015, 1.0
  %v1019 = vrcp.pop %v1016
  %v1020 = vmul.f32 1.0, %v1019
  %v1021 = vrcp.pop %v1017
  %v1022 = vmul.f32 1.0, %v1021
  %v1023 = vrcp.pop %v1018
  %v1024 = vmul.f32 1.0, %v1023
  %v1025 = vtanh.pop %v1006
  %v1026 = vmul.f32 %v1022, %v910
  %v1027 = vmul.f32 %v1020, %v1025
  %v1028 = vadd.f32 %v1026, %v1027
  %v1029 = vtanh.pop %v1028
  %v1030 = vmul.f32 %v1024, %v1029
  %v1031 = vpack.c.bf16 %v1030, %v1030
  %s1032 = scalar_lea.vmem %s3, 24
  %1033 = vst [vmem:[%s1032] sm:$0xf] %v1031
  // Predicated region
  $region14: #{simple_decoder_forward.6} parent=0 // pred_check
    _
  $region15: #{simple_decoder_forward.6} parent=0 // pred_check_branch
    %1035 = sbr.rel (0) target = $region17
  $region16: #{simple_decoder_forward.6} parent=0 // pred_region
    _
  $region17: #{simple_decoder_forward.6} parent=0 // pred_fallthru
    _
  // Predicated region
  $region18: #{simple_decoder_forward.6} parent=0 // pred_check
    _
  $region19: #{simple_decoder_forward.6} parent=0 // pred_check_branch
    %1037 = sbr.rel (0) target = $region21
  $region20: #{simple_decoder_forward.6} parent=0 // pred_region
    _
  $region21: #{simple_decoder_forward.6} parent=0 // pred_fallthru
    _

</llo_original>
